<compile_context>
chip_gen: v7x
topology: tpu7x:2x2x1
jax: 0.10.0
libtpu: 0.0.40
codegen_flags: <defaults>
</compile_context>

<pallas_src>
import functools

import jax
import jax.numpy as jnp
from jax.experimental import pallas as pl
from jax.experimental.pallas import tpu as pltpu

_LANE = 128


def _round_up(x, m):
    return ((x + m - 1) // m) * m


def _pick_tile_h(h_out, stride, ks, dilation, wp, cinp, coutp, w_out,
                 vmem_budget_bytes):
    """Largest divisor of h_out whose per-step working set fits the budget."""
    halo = (ks - 1) * dilation

    def working_set(th):
        tin = (th - 1) * stride + halo + 1
        in_bytes = 2 * tin * wp * cinp * 4          # double-buffered input slab
        out_bytes = 2 * th * w_out * coutp * 4      # double-buffered output blk
        tmp_bytes = (tin * wp + 2 * th * w_out) * cinp * 4  # rough in-kernel tmp
        return in_bytes + out_bytes + tmp_bytes

    divisors = [d for d in range(1, h_out + 1) if h_out % d == 0]
    fitting = [d for d in divisors if working_set(d) <= vmem_budget_bytes] or [1]
    tile = max(fitting)
    # Prefer >=2 row tiles when the image is tall enough: gives the manual
    # double-buffer something to prefetch even at N=1 and a second axis of work
    # for dual-TensorCore chips (v7x).
    if tile == h_out and h_out >= 8:
        smaller = [d for d in fitting if d <= h_out // 2]
        if smaller:
            tile = max(smaller)
    return tile


def _sepconv_kernel(x_hbm, dw_ref, pw_ref, b1_ref, b2_ref, o_ref, xbuf, sem,
                    *, ks, stride, dilation, tile_h_out, tile_h_in, w_out,
                    with_act):
    # x_hbm:  (N, Hp, Wp, Cinp)  padded NHWC input, left in HBM (pl.ANY)
    # dw_ref: (ks, ks, Cinp)     depthwise filter, BN1 scale folded in
    # pw_ref: (Cinp, Coutp)      pointwise filter, BN2 scale folded in
    # b1/b2:  (1, Cinp/Coutp)    BN shifts
    # xbuf:   (2, tile_h_in, Wp, Cinp) double-buffered row slab (VMEM scratch)
    b = pl.program_id(0)
    t = pl.program_id(1)
    n_tiles = pl.num_programs(1)
    cinp = xbuf.shape[-1]
    coutp = pw_ref.shape[-1]

    def start_fetch(tile_idx, slot):
        row0 = tile_idx * (tile_h_out * stride)
        pltpu.make_async_copy(
            x_hbm.at[b, pl.ds(row0, tile_h_in)],
            xbuf.at[slot],
            sem.at[slot],
        ).start()

    # Prime the double buffer at the start of every batch's row-tile sequence.
    # (Priming/prefetch are confined to one batch so the batch grid axis can be
    #  safely marked "parallel" for megacore / dual-TC chips.)
    @pl.when(t == 0)
    def _():
        start_fetch(0, 0)

    slot = t & 1

    # Wait for the current row slab (shape-only reconstruction of the copy).
    pltpu.make_async_copy(
        x_hbm.at[0, pl.ds(0, tile_h_in)], xbuf.at[slot], sem.at[slot]).wait()

    # Prefetch the next row slab of this batch while we compute on this one.
    @pl.when(t + 1 < n_tiles)
    def _():
        start_fetch(t + 1, 1 - slot)

    xb = xbuf[slot]                      # (tile_h_in, Wp, Cinp) f32
    dw = dw_ref[...]                     # (ks, ks, Cinp)

    # ---- depthwise conv on the VPU (BN1 scale already folded into dw) ----
    # TODO(synk): for stride > 1 the per-tap strided slice is an in-VMEM
    #             relayout; a per-phase deinterleave before the tap loop would
    #             be cheaper (test shapes use stride=1 -> contiguous slices).
    acc = jnp.zeros((tile_h_out, w_out, cinp), jnp.float32)
    for ky in range(ks):
        for kx in range(ks):
            y0 = ky * dilation
            x0 = kx * dilation
            win = xb[y0:y0 + (tile_h_out - 1) * stride + 1:stride,
                     x0:x0 + (w_out - 1) * stride + 1:stride, :]
            acc = acc + win * dw[ky, kx, :].reshape(1, 1, cinp)

    # ---- BN1 shift (+ ReLU) ----
    y = acc + b1_ref[...].reshape(1, 1, cinp)
    if with_act:
        y = jnp.maximum(y, 0.0)

    # ---- pointwise 1x1 conv on the MXU (BN2 scale already folded into pw) ---
    # cinp/coutp are multiples of 128; when w_out % 8 == 0 (true here) these
    # reshapes do not cross (8,128) tiles, so no relayout copies.
    y2 = jnp.dot(y.reshape(tile_h_out * w_out, cinp).astype(pw_ref.dtype),
                 pw_ref[...], preferred_element_type=jnp.float32)

    # ---- BN2 shift (+ ReLU) ----
    y2 = y2 + b2_ref[...]
    if with_act:
        y2 = jnp.maximum(y2, 0.0)

    o_ref[0] = y2.reshape(tile_h_out, w_out, coutp).astype(o_ref.dtype)


def sep_conv_block(x_nchw, params, *, ks=3, stride=1, dilation=1,
                   with_act=False, mxu_dtype=jnp.bfloat16,
                   vmem_budget_bytes=12 * 1024 * 1024):
    """Pallas implementation of SepConvBlock.forward (eval-mode BN)."""
    eps = 1e-5
    n, cin, h, w = x_nchw.shape
    dw_w = params["dw_weight"]          # (Cin, 1, ks, ks)  PyTorch layout
    pw_w = params["pw_weight"]          # (Cout, Cin, 1, 1)
    cout = pw_w.shape[0]

    # ---- fold BN scales into the conv weights (exact: convs are linear) ----
    s1 = params["bn1_gamma"] / jnp.sqrt(params["bn1_var"] + eps)
    b1 = params["bn1_beta"] - params["bn1_mean"] * s1
    s2 = params["bn2_gamma"] / jnp.sqrt(params["bn2_var"] + eps)
    b2 = params["bn2_beta"] - params["bn2_mean"] * s2

    dw = jnp.transpose(dw_w[:, 0, :, :], (1, 2, 0)).astype(jnp.float32)
    dw = dw * s1.reshape(1, 1, cin)                                  # (ks,ks,Cin)
    pw = jnp.transpose(pw_w[:, :, 0, 0], (1, 0)).astype(jnp.float32)
    pw = pw * s2.reshape(1, cout)                                    # (Cin,Cout)

    # ---- lane-dense channel padding (128-lane axis) ----
    cinp = _round_up(cin, _LANE)
    coutp = _round_up(cout, _LANE)
    dw = jnp.pad(dw, ((0, 0), (0, 0), (0, cinp - cin)))
    pw = jnp.pad(pw, ((0, cinp - cin), (0, coutp - cout))).astype(mxu_dtype)
    b1 = jnp.pad(b1.astype(jnp.float32), (0, cinp - cin)).reshape(1, cinp)
    b2 = jnp.pad(b2.astype(jnp.float32), (0, coutp - cout)).reshape(1, coutp)

    # SepConvBlock always passes padding=dilation to the depthwise conv
    # (its `padding` ctor arg is ignored), so pad == dilation here by spec.
    pad = dilation
    h_out = (h + 2 * pad - dilation * (ks - 1) - 1) // stride + 1
    w_out = (w + 2 * pad - dilation * (ks - 1) - 1) // stride + 1

    # Single wrapper-side materialization: NCHW->NHWC transpose fused (by XLA)
    # with the spatial halo pad and the channel-lane pad.
    x_nhwc = jnp.transpose(x_nchw, (0, 2, 3, 1)).astype(jnp.float32)
    x_pad = jnp.pad(x_nhwc,
                    ((0, 0), (pad, pad), (pad, pad), (0, cinp - cin)))
    hp, wp = h + 2 * pad, w + 2 * pad

    # ---- spatial row tiling (bounded VMEM working set on every generation) --
    tile_h_out = _pick_tile_h(h_out, stride, ks, dilation, wp, cinp, coutp,
                              w_out, vmem_budget_bytes)
    tile_h_in = (tile_h_out - 1) * stride + (ks - 1) * dilation + 1
    assert h_out % tile_h_out == 0
    n_tiles = h_out // tile_h_out

    kernel = functools.partial(
        _sepconv_kernel, ks=ks, stride=stride, dilation=dilation,
        tile_h_out=tile_h_out, tile_h_in=tile_h_in, w_out=w_out,
        with_act=with_act)

    out_nhwc = pl.pallas_call(
        kernel,
        out_shape=jax.ShapeDtypeStruct((n, h_out, w_out, coutp), jnp.float32),
        grid=(n, n_tiles),
        in_specs=[
            # Input stays in HBM; row slabs are DMA'd manually with a halo.
            pl.BlockSpec(memory_space=pl.ANY),
            # Constant-index weight blocks: Pallas keeps them resident across
            # grid steps (no re-DMA since the block index never changes).
            pl.BlockSpec((ks, ks, cinp), lambda b, t: (0, 0, 0)),
            pl.BlockSpec((cinp, coutp), lambda b, t: (0, 0)),
            pl.BlockSpec((1, cinp), lambda b, t: (0, 0)),
            pl.BlockSpec((1, coutp), lambda b, t: (0, 0)),
        ],
        out_specs=pl.BlockSpec((1, tile_h_out, w_out, coutp),
                               lambda b, t: (b, t, 0, 0)),
        scratch_shapes=[
            pltpu.VMEM((2, tile_h_in, wp, cinp), jnp.float32),
            pltpu.SemaphoreType.DMA((2,)),
        ],
        compiler_params=pltpu.CompilerParams(
            dimension_semantics=("parallel", "arbitrary")),
    )(x_pad, dw, pw, b1, b2)

    # strip the channel padding, back to NCHW
    return jnp.transpose(out_nhwc[..., :cout], (0, 3, 1, 2))


def _reference(x_nchw, params, *, ks=3, stride=1, dilation=1, with_act=False):
    """Pure-JAX reference (lax convs, f32) for correctness checking."""
    eps = 1e-5
    x = jnp.transpose(x_nchw, (0, 2, 3, 1)).astype(jnp.float32)   # NHWC
    cin = x.shape[-1]
    dw = jnp.transpose(params["dw_weight"], (2, 3, 1, 0))          # (ks,ks,1,Cin)
    pw = jnp.transpose(params["pw_weight"], (2, 3, 1, 0))          # (1,1,Cin,Cout)
    pad = dilation
    y = jax.lax.conv_general_dilated(
        x, dw, window_strides=(stride, stride),
        padding=((pad, pad), (pad, pad)),
        rhs_dilation=(dilation, dilation),
        dimension_numbers=("NHWC", "HWIO", "NHWC"),
        feature_group_count=cin)
    s1 = params["bn1_gamma"] / jnp.sqrt(params["bn1_var"] + eps)
    y = (y - params["bn1_mean"]) * s1 + params["bn1_beta"]
    if with_act:
        y = jnp.maximum(y, 0.0)
    y = jax.lax.conv_general_dilated(
        y, pw, window_strides=(1, 1), padding="VALID",
        dimension_numbers=("NHWC", "HWIO", "NHWC"))
    s2 = params["bn2_gamma"] / jnp.sqrt(params["bn2_var"] + eps)
    y = (y - params["bn2_mean"]) * s2 + params["bn2_beta"]
    if with_act:
        y = jnp.maximum(y, 0.0)
    return jnp.transpose(y, (0, 3, 1, 2))


def make_params(key, in_chan, out_chan, ks=3):
    ks_keys = jax.random.split(key, 8)
    # kaiming_normal_(a=1): gain = sqrt(2/(1+1)) = 1, std = 1/sqrt(fan_in)
    dw_std = 1.0 / jnp.sqrt(1.0 * ks * ks)              # groups=in_chan
    pw_std = 1.0 / jnp.sqrt(1.0 * in_chan)
    return {
        "dw_weight": dw_std * jax.random.normal(ks_keys[0], (in_chan, 1, ks, ks), jnp.float32),
        "pw_weight": pw_std * jax.random.normal(ks_keys[1], (out_chan, in_chan, 1, 1), jnp.float32),
        "bn1_gamma": 1.0 + 0.1 * jax.random.normal(ks_keys[2], (in_chan,), jnp.float32),
        "bn1_beta": 0.1 * jax.random.normal(ks_keys[3], (in_chan,), jnp.float32),
        "bn1_mean": 0.1 * jax.random.normal(ks_keys[4], (in_chan,), jnp.float32),
        "bn1_var": jnp.abs(1.0 + 0.1 * jax.random.normal(ks_keys[5], (in_chan,), jnp.float32)),
        "bn2_gamma": 1.0 + 0.1 * jax.random.normal(ks_keys[6], (out_chan,), jnp.float32),
        "bn2_beta": 0.1 * jax.random.normal(ks_keys[7], (out_chan,), jnp.float32),
        "bn2_mean": jnp.zeros((out_chan,), jnp.float32),
        "bn2_var": jnp.ones((out_chan,), jnp.float32),
    }


if __name__ == "__main__":
    key = jax.random.PRNGKey(0)
    k_x, k_p = jax.random.split(key)

    N, CIN, COUT, H, W = 2, 4, 8, 16, 16
    x = jax.random.normal(k_x, (N, CIN, H, W), jnp.float32)       # NCHW (PyTorch)
    params = make_params(k_p, CIN, COUT, ks=3)

    ref = _reference(x, params, ks=3, stride=1, dilation=1, with_act=True)

    # Exact-semantics path: f32 MXU operands -> tight tolerance.
    out_f32 = jax.block_until_ready(
        sep_conv_block(x, params, ks=3, stride=1, dilation=1, with_act=True,
                       mxu_dtype=jnp.float32))
    assert out_f32.shape == (N, COUT, H, W), out_f32.shape
    assert jnp.allclose(out_f32, ref, atol=1e-4, rtol=1e-4), \
        float(jnp.max(jnp.abs(out_f32 - ref)))

    # Fast path (default): bf16 MXU operands (v5e/v6e/v7x native) with f32
    # accumulation -> looser tolerance vs. the f32 reference (flagged in the
    # performance review).
    out_bf16 = jax.block_until_ready(
        sep_conv_block(x, params, ks=3, stride=1, dilation=1, with_act=True,
                       mxu_dtype=jnp.bfloat16))
    assert out_bf16.shape == (N, COUT, H, W), out_bf16.shape
    assert jnp.allclose(out_bf16, ref, atol=1e-1, rtol=2e-2), \
        float(jnp.max(jnp.abs(out_bf16 - ref)))

    print("KERNEL_OK")
</pallas_src>

<mosaic_0001>
module attributes {stable_mosaic.version = 11 : i64} {
  func.func @_sepconv_kernel(%arg0: i32, %arg1: i32, %arg2: memref<2x18x18x128xf32, #tpu.memory_space<any>>, %arg3: memref<3x3x128xf32, #tpu.memory_space<vmem>>, %arg4: memref<128x128xf32, #tpu.memory_space<vmem>>, %arg5: memref<1x128xf32, #tpu.memory_space<vmem>>, %arg6: memref<1x128xf32, #tpu.memory_space<vmem>>, %arg7: memref<1x8x16x128xf32, #tpu.memory_space<vmem>>, %arg8: memref<2x10x18x128xf32, #tpu.memory_space<vmem>>, %arg9: memref<2x!tpu.dma_semaphore, #tpu.memory_space<semaphore_mem>>) attributes {dimension_semantics = [#tpu.dimension_semantics<parallel>, #tpu.dimension_semantics<arbitrary>], iteration_bounds = array<i64: 2, 2>, scalar_prefetch = 0 : i64, scratch_operands = 2 : i64, tpu.core_type = #tpu.core_type<tc>, window_params = [{}, {pipeline_mode = #tpu.pipeline_mode<synchronous>, transform_indices = @transform_1, window_bounds = array<i64: 3, 3, 128>}, {pipeline_mode = #tpu.pipeline_mode<synchronous>, transform_indices = @transform_2, window_bounds = array<i64: 128, 128>}, {pipeline_mode = #tpu.pipeline_mode<synchronous>, transform_indices = @transform_3, window_bounds = array<i64: 1, 128>}, {pipeline_mode = #tpu.pipeline_mode<synchronous>, transform_indices = @transform_4, window_bounds = array<i64: 1, 128>}, {transform_indices = @transform_5, window_bounds = array<i64: 1, 8, 16, 128>}]} {
    %c0_i32 = arith.constant 0 : i32
    %0 = arith.cmpi eq, %arg1, %c0_i32 : i32
    %1 = arith.extui %0 : i1 to i32
    %c0_i32_0 = arith.constant 0 : i32
    %2 = arith.cmpi ne, %1, %c0_i32_0 : i32
    scf.if %2 {
      %c0_i32_28 = arith.constant 0 : i32
      %c0_i32_29 = arith.constant 0 : i32
      %c0_i32_30 = arith.constant 0 : i32
      %c0_i32_31 = arith.constant 0 : i32
      %c0_i32_32 = arith.constant 0 : i32
      %100 = tpu.memref_slice %arg2[%arg0, %c0_i32_30, %c0_i32_31, %c0_i32_32] : memref<2x18x18x128xf32, #tpu.memory_space<any>> -> memref<1x10x18x128xf32, #tpu.memory_space<any>>
      %101 = tpu.memref_squeeze %100 : memref<1x10x18x128xf32, #tpu.memory_space<any>> -> memref<10x18x128xf32, #tpu.memory_space<any>>
      %c0_i32_33 = arith.constant 0 : i32
      %c0_i32_34 = arith.constant 0 : i32
      %c0_i32_35 = arith.constant 0 : i32
      %102 = tpu.memref_slice %arg8[%c0_i32_28, %c0_i32_33, %c0_i32_34, %c0_i32_35] : memref<2x10x18x128xf32, #tpu.memory_space<vmem>> -> memref<1x10x18x128xf32, #tpu.memory_space<vmem>>
      %103 = tpu.memref_squeeze %102 : memref<1x10x18x128xf32, #tpu.memory_space<vmem>> -> memref<10x18x128xf32, #tpu.memory_space<vmem>>
      %104 = tpu.memref_slice %arg9[%c0_i32_29] : memref<2x!tpu.dma_semaphore, #tpu.memory_space<semaphore_mem>> -> memref<1x!tpu.dma_semaphore, #tpu.memory_space<semaphore_mem>>
      %105 = tpu.memref_squeeze %104 : memref<1x!tpu.dma_semaphore, #tpu.memory_space<semaphore_mem>> -> memref<!tpu.dma_semaphore, #tpu.memory_space<semaphore_mem>>
      tpu.enqueue_dma source(%101 : memref<10x18x128xf32, #tpu.memory_space<any>>) target(%103 : memref<10x18x128xf32, #tpu.memory_space<vmem>>) target_semaphore(%105 : memref<!tpu.dma_semaphore, #tpu.memory_space<semaphore_mem>>)
    } else {
    }
    %c1_i32 = arith.constant 1 : i32
    %3 = arith.andi %arg1, %c1_i32 : i32
    %c0_i32_1 = arith.constant 0 : i32
    %c0_i32_2 = arith.constant 0 : i32
    %c0_i32_3 = arith.constant 0 : i32
    %c0_i32_4 = arith.constant 0 : i32
    %4 = tpu.memref_slice %arg2[%c0_i32_1, %c0_i32_2, %c0_i32_3, %c0_i32_4] : memref<2x18x18x128xf32, #tpu.memory_space<any>> -> memref<1x10x18x128xf32, #tpu.memory_space<any>>
    %5 = tpu.memref_squeeze %4 : memref<1x10x18x128xf32, #tpu.memory_space<any>> -> memref<10x18x128xf32, #tpu.memory_space<any>>
    %c0_i32_5 = arith.constant 0 : i32
    %c0_i32_6 = arith.constant 0 : i32
    %c0_i32_7 = arith.constant 0 : i32
    %6 = tpu.memref_slice %arg8[%3, %c0_i32_5, %c0_i32_6, %c0_i32_7] : memref<2x10x18x128xf32, #tpu.memory_space<vmem>> -> memref<1x10x18x128xf32, #tpu.memory_space<vmem>>
    %7 = tpu.memref_squeeze %6 : memref<1x10x18x128xf32, #tpu.memory_space<vmem>> -> memref<10x18x128xf32, #tpu.memory_space<vmem>>
    %8 = tpu.memref_slice %arg9[%3] : memref<2x!tpu.dma_semaphore, #tpu.memory_space<semaphore_mem>> -> memref<1x!tpu.dma_semaphore, #tpu.memory_space<semaphore_mem>>
    %9 = tpu.memref_squeeze %8 : memref<1x!tpu.dma_semaphore, #tpu.memory_space<semaphore_mem>> -> memref<!tpu.dma_semaphore, #tpu.memory_space<semaphore_mem>>
    tpu.wait_dma2 semaphore(%9 : memref<!tpu.dma_semaphore, #tpu.memory_space<semaphore_mem>>) src(%5 : memref<10x18x128xf32, #tpu.memory_space<any>>) dst(%7 : memref<10x18x128xf32, #tpu.memory_space<vmem>>)
    %c1_i32_8 = arith.constant 1 : i32
    %10 = arith.addi %arg1, %c1_i32_8 : i32
    %c2_i32 = arith.constant 2 : i32
    %11 = arith.cmpi slt, %10, %c2_i32 : i32
    %12 = arith.extui %11 : i1 to i32
    %c0_i32_9 = arith.constant 0 : i32
    %13 = arith.cmpi ne, %12, %c0_i32_9 : i32
    scf.if %13 {
      %c1_i32_28 = arith.constant 1 : i32
      %100 = arith.addi %arg1, %c1_i32_28 : i32
      %c1_i32_29 = arith.constant 1 : i32
      %101 = arith.subi %c1_i32_29, %3 : i32
      %c8_i32 = arith.constant 8 : i32
      %102 = arith.muli %100, %c8_i32 : i32
      %c0_i32_30 = arith.constant 0 : i32
      %c0_i32_31 = arith.constant 0 : i32
      %103 = tpu.memref_slice %arg2[%arg0, %102, %c0_i32_30, %c0_i32_31] : memref<2x18x18x128xf32, #tpu.memory_space<any>> -> memref<1x10x18x128xf32, #tpu.memory_space<any>>
      %104 = tpu.memref_squeeze %103 : memref<1x10x18x128xf32, #tpu.memory_space<any>> -> memref<10x18x128xf32, #tpu.memory_space<any>>
      %c0_i32_32 = arith.constant 0 : i32
      %c0_i32_33 = arith.constant 0 : i32
      %c0_i32_34 = arith.constant 0 : i32
      %105 = tpu.memref_slice %arg8[%101, %c0_i32_32, %c0_i32_33, %c0_i32_34] : memref<2x10x18x128xf32, #tpu.memory_space<vmem>> -> memref<1x10x18x128xf32, #tpu.memory_space<vmem>>
      %106 = tpu.memref_squeeze %105 : memref<1x10x18x128xf32, #tpu.memory_space<vmem>> -> memref<10x18x128xf32, #tpu.memory_space<vmem>>
      %107 = tpu.memref_slice %arg9[%101] : memref<2x!tpu.dma_semaphore, #tpu.memory_space<semaphore_mem>> -> memref<1x!tpu.dma_semaphore, #tpu.memory_space<semaphore_mem>>
      %108 = tpu.memref_squeeze %107 : memref<1x!tpu.dma_semaphore, #tpu.memory_space<semaphore_mem>> -> memref<!tpu.dma_semaphore, #tpu.memory_space<semaphore_mem>>
      tpu.enqueue_dma source(%104 : memref<10x18x128xf32, #tpu.memory_space<any>>) target(%106 : memref<10x18x128xf32, #tpu.memory_space<vmem>>) target_semaphore(%108 : memref<!tpu.dma_semaphore, #tpu.memory_space<semaphore_mem>>)
    } else {
    }
    %14 = arith.index_cast %3 : i32 to index
    %c0 = arith.constant 0 : index
    %c0_10 = arith.constant 0 : index
    %c0_11 = arith.constant 0 : index
    %15 = vector.load %arg8[%14, %c0, %c0_10, %c0_11] : memref<2x10x18x128xf32, #tpu.memory_space<vmem>>, vector<1x10x18x128xf32>
    %16 = vector.shape_cast %15 : vector<1x10x18x128xf32> to vector<10x18x128xf32>
    %c0_12 = arith.constant 0 : index
    %c0_13 = arith.constant 0 : index
    %c0_14 = arith.constant 0 : index
    %17 = vector.load %arg3[%c0_12, %c0_13, %c0_14] : memref<3x3x128xf32, #tpu.memory_space<vmem>>, vector<3x3x128xf32>
    %cst = arith.constant 0.000000e+00 : f32
    %18 = vector.broadcast %cst : f32 to vector<8x16x128xf32>
    %19 = vector.extract_strided_slice %16 {offsets = [0, 0, 0], sizes = [8, 16, 128], strides = [1, 1, 1]} : vector<10x18x128xf32> to vector<8x16x128xf32>
    %20 = vector.extract_strided_slice %17 {offsets = [0, 0, 0], sizes = [1, 1, 128], strides = [1, 1, 1]} : vector<3x3x128xf32> to vector<1x1x128xf32>
    %21 = vector.shape_cast %20 : vector<1x1x128xf32> to vector<128xf32>
    %22 = vector.shape_cast %21 : vector<128xf32> to vector<1x1x128xf32>
    %23 = vector.broadcast %22 : vector<1x1x128xf32> to vector<8x16x128xf32>
    %24 = arith.mulf %19, %23 : vector<8x16x128xf32>
    %25 = arith.addf %18, %24 : vector<8x16x128xf32>
    %26 = vector.extract_strided_slice %16 {offsets = [0, 1, 0], sizes = [8, 16, 128], strides = [1, 1, 1]} : vector<10x18x128xf32> to vector<8x16x128xf32>
    %27 = vector.extract_strided_slice %17 {offsets = [0, 1, 0], sizes = [1, 1, 128], strides = [1, 1, 1]} : vector<3x3x128xf32> to vector<1x1x128xf32>
    %28 = vector.shape_cast %27 : vector<1x1x128xf32> to vector<128xf32>
    %29 = vector.shape_cast %28 : vector<128xf32> to vector<1x1x128xf32>
    %30 = vector.broadcast %29 : vector<1x1x128xf32> to vector<8x16x128xf32>
    %31 = arith.mulf %26, %30 : vector<8x16x128xf32>
    %32 = arith.addf %25, %31 : vector<8x16x128xf32>
    %33 = vector.extract_strided_slice %16 {offsets = [0, 2, 0], sizes = [8, 16, 128], strides = [1, 1, 1]} : vector<10x18x128xf32> to vector<8x16x128xf32>
    %34 = vector.extract_strided_slice %17 {offsets = [0, 2, 0], sizes = [1, 1, 128], strides = [1, 1, 1]} : vector<3x3x128xf32> to vector<1x1x128xf32>
    %35 = vector.shape_cast %34 : vector<1x1x128xf32> to vector<128xf32>
    %36 = vector.shape_cast %35 : vector<128xf32> to vector<1x1x128xf32>
    %37 = vector.broadcast %36 : vector<1x1x128xf32> to vector<8x16x128xf32>
    %38 = arith.mulf %33, %37 : vector<8x16x128xf32>
    %39 = arith.addf %32, %38 : vector<8x16x128xf32>
    %40 = vector.extract_strided_slice %16 {offsets = [1, 0, 0], sizes = [8, 16, 128], strides = [1, 1, 1]} : vector<10x18x128xf32> to vector<8x16x128xf32>
    %41 = vector.extract_strided_slice %17 {offsets = [1, 0, 0], sizes = [1, 1, 128], strides = [1, 1, 1]} : vector<3x3x128xf32> to vector<1x1x128xf32>
    %42 = vector.shape_cast %41 : vector<1x1x128xf32> to vector<128xf32>
    %43 = vector.shape_cast %42 : vector<128xf32> to vector<1x1x128xf32>
    %44 = vector.broadcast %43 : vector<1x1x128xf32> to vector<8x16x128xf32>
    %45 = arith.mulf %40, %44 : vector<8x16x128xf32>
    %46 = arith.addf %39, %45 : vector<8x16x128xf32>
    %47 = vector.extract_strided_slice %16 {offsets = [1, 1, 0], sizes = [8, 16, 128], strides = [1, 1, 1]} : vector<10x18x128xf32> to vector<8x16x128xf32>
    %48 = vector.extract_strided_slice %17 {offsets = [1, 1, 0], sizes = [1, 1, 128], strides = [1, 1, 1]} : vector<3x3x128xf32> to vector<1x1x128xf32>
    %49 = vector.shape_cast %48 : vector<1x1x128xf32> to vector<128xf32>
    %50 = vector.shape_cast %49 : vector<128xf32> to vector<1x1x128xf32>
    %51 = vector.broadcast %50 : vector<1x1x128xf32> to vector<8x16x128xf32>
    %52 = arith.mulf %47, %51 : vector<8x16x128xf32>
    %53 = arith.addf %46, %52 : vector<8x16x128xf32>
    %54 = vector.extract_strided_slice %16 {offsets = [1, 2, 0], sizes = [8, 16, 128], strides = [1, 1, 1]} : vector<10x18x128xf32> to vector<8x16x128xf32>
    %55 = vector.extract_strided_slice %17 {offsets = [1, 2, 0], sizes = [1, 1, 128], strides = [1, 1, 1]} : vector<3x3x128xf32> to vector<1x1x128xf32>
    %56 = vector.shape_cast %55 : vector<1x1x128xf32> to vector<128xf32>
    %57 = vector.shape_cast %56 : vector<128xf32> to vector<1x1x128xf32>
    %58 = vector.broadcast %57 : vector<1x1x128xf32> to vector<8x16x128xf32>
    %59 = arith.mulf %54, %58 : vector<8x16x128xf32>
    %60 = arith.addf %53, %59 : vector<8x16x128xf32>
    %61 = vector.extract_strided_slice %16 {offsets = [2, 0, 0], sizes = [8, 16, 128], strides = [1, 1, 1]} : vector<10x18x128xf32> to vector<8x16x128xf32>
    %62 = vector.extract_strided_slice %17 {offsets = [2, 0, 0], sizes = [1, 1, 128], strides = [1, 1, 1]} : vector<3x3x128xf32> to vector<1x1x128xf32>
    %63 = vector.shape_cast %62 : vector<1x1x128xf32> to vector<128xf32>
    %64 = vector.shape_cast %63 : vector<128xf32> to vector<1x1x128xf32>
    %65 = vector.broadcast %64 : vector<1x1x128xf32> to vector<8x16x128xf32>
    %66 = arith.mulf %61, %65 : vector<8x16x128xf32>
    %67 = arith.addf %60, %66 : vector<8x16x128xf32>
    %68 = vector.extract_strided_slice %16 {offsets = [2, 1, 0], sizes = [8, 16, 128], strides = [1, 1, 1]} : vector<10x18x128xf32> to vector<8x16x128xf32>
    %69 = vector.extract_strided_slice %17 {offsets = [2, 1, 0], sizes = [1, 1, 128], strides = [1, 1, 1]} : vector<3x3x128xf32> to vector<1x1x128xf32>
    %70 = vector.shape_cast %69 : vector<1x1x128xf32> to vector<128xf32>
    %71 = vector.shape_cast %70 : vector<128xf32> to vector<1x1x128xf32>
    %72 = vector.broadcast %71 : vector<1x1x128xf32> to vector<8x16x128xf32>
    %73 = arith.mulf %68, %72 : vector<8x16x128xf32>
    %74 = arith.addf %67, %73 : vector<8x16x128xf32>
    %75 = vector.extract_strided_slice %16 {offsets = [2, 2, 0], sizes = [8, 16, 128], strides = [1, 1, 1]} : vector<10x18x128xf32> to vector<8x16x128xf32>
    %76 = vector.extract_strided_slice %17 {offsets = [2, 2, 0], sizes = [1, 1, 128], strides = [1, 1, 1]} : vector<3x3x128xf32> to vector<1x1x128xf32>
    %77 = vector.shape_cast %76 : vector<1x1x128xf32> to vector<128xf32>
    %78 = vector.shape_cast %77 : vector<128xf32> to vector<1x1x128xf32>
    %79 = vector.broadcast %78 : vector<1x1x128xf32> to vector<8x16x128xf32>
    %80 = arith.mulf %75, %79 : vector<8x16x128xf32>
    %81 = arith.addf %74, %80 : vector<8x16x128xf32>
    %c0_15 = arith.constant 0 : index
    %c0_16 = arith.constant 0 : index
    %82 = vector.load %arg5[%c0_15, %c0_16] : memref<1x128xf32, #tpu.memory_space<vmem>>, vector<1x128xf32>
    %83 = vector.shape_cast %82 : vector<1x128xf32> to vector<1x1x128xf32>
    %84 = vector.broadcast %83 : vector<1x1x128xf32> to vector<8x16x128xf32>
    %85 = arith.addf %81, %84 : vector<8x16x128xf32>
    %cst_17 = arith.constant 0.000000e+00 : f32
    %86 = vector.broadcast %cst_17 : f32 to vector<8x16x128xf32>
    %87 = arith.maximumf %85, %86 : vector<8x16x128xf32>
    %88 = vector.shape_cast %87 : vector<8x16x128xf32> to vector<128x128xf32>
    %c0_18 = arith.constant 0 : index
    %c0_19 = arith.constant 0 : index
    %89 = vector.load %arg4[%c0_18, %c0_19] : memref<128x128xf32, #tpu.memory_space<vmem>>, vector<128x128xf32>
    %cst_20 = arith.constant dense<0.000000e+00> : vector<128x128xf32>
    %90 = tpu.matmul %88, %89, %cst_20 {dimension_numbers = #tpu.dot_dimension_numbers<[1], [0], [0], [1], [0, 0, 1, 1], [], []>} : vector<128x128xf32>, vector<128x128xf32>, vector<128x128xf32> -> vector<128x128xf32>
    %c0_21 = arith.constant 0 : index
    %c0_22 = arith.constant 0 : index
    %91 = vector.load %arg6[%c0_21, %c0_22] : memref<1x128xf32, #tpu.memory_space<vmem>>, vector<1x128xf32>
    %92 = vector.broadcast %91 : vector<1x128xf32> to vector<128x128xf32>
    %93 = arith.addf %90, %92 : vector<128x128xf32>
    %cst_23 = arith.constant 0.000000e+00 : f32
    %94 = vector.broadcast %cst_23 : f32 to vector<128x128xf32>
    %95 = arith.maximumf %93, %94 : vector<128x128xf32>
    %96 = vector.shape_cast %95 : vector<128x128xf32> to vector<8x16x128xf32>
    %c0_24 = arith.constant 0 : index
    %c0_25 = arith.constant 0 : index
    %c0_26 = arith.constant 0 : index
    %c0_27 = arith.constant 0 : index
    %97 = vector.load %arg7[%c0_24, %c0_25, %c0_26, %c0_27] : memref<1x8x16x128xf32, #tpu.memory_space<vmem>>, vector<1x8x16x128xf32>
    %98 = vector.shape_cast %97 : vector<1x8x16x128xf32> to vector<8x16x128xf32>
    %99 = vector.shape_cast %96 : vector<8x16x128xf32> to vector<1x8x16x128xf32>
    tpu.vector_store %arg7[%c0_24, %c0_25, %c0_26, %c0_27], %99 {strides = array<i32>} : memref<1x8x16x128xf32, #tpu.memory_space<vmem>>, vector<1x8x16x128xf32>,
    return
  }
  func.func @transform_1(%arg0: i32, %arg1: i32) -> (i32, i32, i32) {
    %c0_i32 = arith.constant 0 : i32
    %c0_i32_0 = arith.constant 0 : i32
    %c0_i32_1 = arith.constant 0 : i32
    %c0_i32_2 = arith.constant 0 : i32
    return %c0_i32, %c0_i32_0, %c0_i32_1 : i32, i32, i32
  }
  func.func @transform_2(%arg0: i32, %arg1: i32) -> (i32, i32) {
    %c0_i32 = arith.constant 0 : i32
    %c0_i32_0 = arith.constant 0 : i32
    %c0_i32_1 = arith.constant 0 : i32
    return %c0_i32, %c0_i32_0 : i32, i32
  }
  func.func @transform_3(%arg0: i32, %arg1: i32) -> (i32, i32) {
    %c0_i32 = arith.constant 0 : i32
    %c0_i32_0 = arith.constant 0 : i32
    %c0_i32_1 = arith.constant 0 : i32
    return %c0_i32, %c0_i32_0 : i32, i32
  }
  func.func @transform_4(%arg0: i32, %arg1: i32) -> (i32, i32) {
    %c0_i32 = arith.constant 0 : i32
    %c0_i32_0 = arith.constant 0 : i32
    %c0_i32_1 = arith.constant 0 : i32
    return %c0_i32, %c0_i32_0 : i32, i32
  }
  func.func @transform_5(%arg0: i32, %arg1: i32) -> (i32, i32, i32, i32) {
    %c0_i32 = arith.constant 0 : i32
    %c0_i32_0 = arith.constant 0 : i32
    %c0_i32_1 = arith.constant 0 : i32
    return %arg0, %arg1, %c0_i32, %c0_i32_0 : i32, i32, i32, i32
  }
}

</mosaic_0001>

<llo_original>
// kernel: tpu_custom_call.1
$region0: #{tpu_custom_call.1}
  #allocation0 [shape = 'u32[]', space=smem, size = 0x4, offset = 0x4, fixed_abs, tag = 'smem constant byte address 0x4 - core index']
  #allocation1 [shape = 'u32[144,128]{1,0:T(1,128)}', space=vmem, size = 0x12000, scoped, tag = 'internal scratch']
  #allocation2 [shape = 'f32[2,10,18,128]{3,2,1,0:T(8,128)}', space=vmem, size = 0x3c000, scoped, tag = 'scratch operand']
  #allocation3 [shape = 's32[2]{0}', space=sflag, size = 0x8, scoped, tag = 'scratch operand']
  #allocation6 [shape = 's32[]', space=sflag, size = 0x4, offset = 0, fixed_abs, tag = 'sflag constant byte address 0x0 - dummy sync flag']
  #allocation7 [shape = 's32[]', space=sflag, size = 0x4, offset = 0, fixed_abs, tag = 'sflag constant byte address 0x0 - dummy sync flag']
  %s0 = inlined_call_operand.vmem [shape: f32[2,18,18,128], index: 0, kind: input, shape index: {}]
  %s1 = inlined_call_operand.vmem [shape: f32[3,3,128], index: 1, kind: input, shape index: {}]
  %s2 = inlined_call_operand.vmem [shape: f32[128,128], index: 2, kind: input, shape index: {}]
  %s3 = inlined_call_operand.vmem [shape: f32[1,128], index: 3, kind: input, shape index: {}]
  %s4 = inlined_call_operand.vmem [shape: f32[1,128], index: 4, kind: input, shape index: {}]
  %s5 = inlined_call_operand.hbm [shape: f32[2,16,16,128], index: 5, kind: output, shape index: {}]
  %s6 = sld [smem:[#allocation0]]
  $region131: #{tpu_custom_call.1} parent=0
    _
  %s8 = ssub.s32 1, %s6
  %s9 = scalar_select 0, %s8, %s6
  $region1: #{tpu_custom_call.1} parent=0
    #allocation4 [shape = 'u8[131072]{0}', space=vmem, size = 0x20000, scoped, tag = 'output window, operand 0']
    #allocation5 [shape = 's32[2]{0}', space=sflag, size = 0x8, scoped, tag = 'scoped memory for tpu_custom_call.1']
    %10 = vsyncpa [#allocation5], 0
    %s11 = scalar_lea.sflag [#allocation5], 1
    %12 = vsyncpa %s11, 0
    loop: start=0, step=1, limit=6
    $region2: #{tpu_custom_call.1} parent=1 // loop_pre_header
      _
    $region3: #{tpu_custom_call.1} parent=1 // loop_header
      %s14 = sphi 0, %s18
      %p15 = scmp.ge.s32.totalorder %s14, 6
      %s21 = sphi 0, %s33
      %s22 = sphi 0, %s29
      %s23 = sphi 0, %s21
      %s24 = sphi 0, %s22
      %s25 = sphi 0, %s23
      %s26 = sphi 0, %s24
      %s34 = sphi 0, %s34
      %s36 = sphi 0, %s34
      %s37 = sphi 0, %s36
      %s51 = sphi 0, %s37
      %s55 = sphi 0, %s55
      %s57 = sphi 0, %s55
      %s58 = sphi 0, %s57
      %s72 = sphi 0, %s58
      %s76 = sphi 0, %s76
      %s78 = sphi 0, %s76
      %s79 = sphi 0, %s78
      %s93 = sphi 0, %s79
      %s97 = sphi 0, %s97
      %s99 = sphi 0, %s97
      %s100 = sphi 0, %s99
      %s114 = sphi 0, %s100
      %s122 = sphi 0, %s124
      %s125 = sphi 0, %s122
      %s126 = sphi 0, %s125
      %s142 = sphi 0, %s126
    $region4: #{tpu_custom_call.1} parent=1 // loop_header_branch
      %17 = sbr.rel (%p15) target = $region8
    $region5: #{tpu_custom_call.1} parent=1 // loop_body
      %s19 = ssub.s32 %s14, 1
      %s20 = ssub.s32 %s14, 2
      %s27 = sadd.s32 1, %s22
      %p28 = scmp.ge.s32.totalorder %s27, 2
      %s29 = scalar_select %p28, 0, %s27
      %s30 = sadd.s32 1, %s21
      %s31 = scalar_select %p28, %s30, %s21
      %p32 = scmp.ge.s32.totalorder %s31, 2
      %s33 = scalar_select %p32, 0, %s31
      %s35 = sadd.s32 %s34, 1
      %p38 = scmp.eq.s32.totalorder %s14, 3
      %p39 = scmp.ne.s32.totalorder %s34, %s36
      %p40 = scmp.eq.s32.totalorder %s14, 0
      %p41 = por %p39, %p40
      %p42 = scmp.ne.s32.totalorder %s34, %s36
      %p43 = scmp.eq.s32.totalorder %s19, 3
      %p44 = por %p42, %p43
      %p45 = scmp.ne.s32.totalorder %s36, %s37
      %p46 = scmp.eq.s32.totalorder %s19, 0
      %p47 = por %p45, %p46
      %p48 = scmp.ne.s32.totalorder %s36, %s37
      %p49 = scmp.eq.s32.totalorder %s20, 3
      %p50 = por %p48, %p49
      %p52 = scmp.ne.s32.totalorder %s37, %s51
      %p53 = scmp.eq.s32.totalorder %s20, 0
      %p54 = por %p52, %p53
      %s56 = sadd.s32 %s55, 1
      %p59 = scmp.eq.s32.totalorder %s14, 3
      %p60 = scmp.ne.s32.totalorder %s55, %s57
      %p61 = scmp.eq.s32.totalorder %s14, 0
      %p62 = por %p60, %p61
      %p63 = scmp.ne.s32.totalorder %s55, %s57
      %p64 = scmp.eq.s32.totalorder %s19, 3
      %p65 = por %p63, %p64
      %p66 = scmp.ne.s32.totalorder %s57, %s58
      %p67 = scmp.eq.s32.totalorder %s19, 0
      %p68 = por %p66, %p67
      %p69 = scmp.ne.s32.totalorder %s57, %s58
      %p70 = scmp.eq.s32.totalorder %s20, 3
      %p71 = por %p69, %p70
      %p73 = scmp.ne.s32.totalorder %s58, %s72
      %p74 = scmp.eq.s32.totalorder %s20, 0
      %p75 = por %p73, %p74
      %s77 = sadd.s32 %s76, 1
      %p80 = scmp.eq.s32.totalorder %s14, 3
      %p81 = scmp.ne.s32.totalorder %s76, %s78
      %p82 = scmp.eq.s32.totalorder %s14, 0
      %p83 = por %p81, %p82
      %p84 = scmp.ne.s32.totalorder %s76, %s78
      %p85 = scmp.eq.s32.totalorder %s19, 3
      %p86 = por %p84, %p85
      %p87 = scmp.ne.s32.totalorder %s78, %s79
      %p88 = scmp.eq.s32.totalorder %s19, 0
      %p89 = por %p87, %p88
      %p90 = scmp.ne.s32.totalorder %s78, %s79
      %p91 = scmp.eq.s32.totalorder %s20, 3
      %p92 = por %p90, %p91
      %p94 = scmp.ne.s32.totalorder %s79, %s93
      %p95 = scmp.eq.s32.totalorder %s20, 0
      %p96 = por %p94, %p95
      %s98 = sadd.s32 %s97, 1
      %p101 = scmp.eq.s32.totalorder %s14, 3
      %p102 = scmp.ne.s32.totalorder %s97, %s99
      %p103 = scmp.eq.s32.totalorder %s14, 0
      %p104 = por %p102, %p103
      %p105 = scmp.ne.s32.totalorder %s97, %s99
      %p106 = scmp.eq.s32.totalorder %s19, 3
      %p107 = por %p105, %p106
      %p108 = scmp.ne.s32.totalorder %s99, %s100
      %p109 = scmp.eq.s32.totalorder %s19, 0
      %p110 = por %p108, %p109
      %p111 = scmp.ne.s32.totalorder %s99, %s100
      %p112 = scmp.eq.s32.totalorder %s20, 3
      %p113 = por %p111, %p112
      %p115 = scmp.ne.s32.totalorder %s100, %s114
      %p116 = scmp.eq.s32.totalorder %s20, 0
      %p117 = por %p115, %p116
      %s118 = ssub.s32 %s21, %s33
      %s119 = ssub.s32 %s22, %s29
      %s120 = sor.u32 %s118, %s119
      %p121 = scmp.eq.s32.totalorder %s120, 0
      %s123 = sadd.s32 %s122, 1
      %s124 = scalar_select %p121, %s122, %s123
      %p127 = pneg %p121
      %p128 = scmp.eq.s32.totalorder %s14, 3
      %p129 = por %p127, %p128
      %p130 = scmp.ne.s32.totalorder %s122, %s125
      %p131 = scmp.eq.s32.totalorder %s14, 0
      %p132 = por %p130, %p131
      %p133 = scmp.ne.s32.totalorder %s122, %s125
      %p134 = scmp.eq.s32.totalorder %s19, 3
      %p135 = por %p133, %p134
      %p136 = scmp.ne.s32.totalorder %s125, %s126
      %p137 = scmp.eq.s32.totalorder %s19, 0
      %p138 = por %p136, %p137
      %p139 = scmp.ne.s32.totalorder %s125, %s126
      %p140 = scmp.eq.s32.totalorder %s20, 3
      %p141 = por %p139, %p140
      %p143 = scmp.ne.s32.totalorder %s126, %s142
      %p144 = scmp.eq.s32.totalorder %s20, 0
      %p145 = por %p143, %p144
      %p146 = scmp.le.s32.totalorder 1, %s14
      %p147 = scmp.lt.s32.totalorder %s14, 5
      %p148 = pnand %p146, %p147
      %p149 = pneg %p148
      // Predicated region
      $region9: #{tpu_custom_call.1} parent=5 // pred_check
        _
      $region10: #{tpu_custom_call.1} parent=5 // pred_check_branch
        %151 = sbr.rel (%p148) target = $region12
      $region11: #{tpu_custom_call.1} parent=5 // pred_region
        %s152 = ssub.s32 %s14, 1
        // Predicated region
        $region13: #{tpu_custom_call.1} parent=11 // pred_check
          %p153 = pneg %p47
        $region14: #{tpu_custom_call.1} parent=11 // pred_check_branch
          %155 = sbr.rel (%p153) target = $region16
        $region15: #{tpu_custom_call.1} parent=11 // pred_region
          _
        $region16: #{tpu_custom_call.1} parent=11 // pred_fallthru
          _
        // Predicated region
        $region17: #{tpu_custom_call.1} parent=11 // pred_check
          %p156 = pneg %p68
        $region18: #{tpu_custom_call.1} parent=11 // pred_check_branch
          %158 = sbr.rel (%p156) target = $region20
        $region19: #{tpu_custom_call.1} parent=11 // pred_region
          _
        $region20: #{tpu_custom_call.1} parent=11 // pred_fallthru
          _
        // Predicated region
        $region21: #{tpu_custom_call.1} parent=11 // pred_check
          %p159 = pneg %p89
        $region22: #{tpu_custom_call.1} parent=11 // pred_check_branch
          %161 = sbr.rel (%p159) target = $region24
        $region23: #{tpu_custom_call.1} parent=11 // pred_region
          _
        $region24: #{tpu_custom_call.1} parent=11 // pred_fallthru
          _
        // Predicated region
        $region25: #{tpu_custom_call.1} parent=11 // pred_check
          %p162 = pneg %p110
        $region26: #{tpu_custom_call.1} parent=11 // pred_check_branch
          %164 = sbr.rel (%p162) target = $region28
        $region27: #{tpu_custom_call.1} parent=11 // pred_region
          _
        $region28: #{tpu_custom_call.1} parent=11 // pred_fallthru
          _
      $region12: #{tpu_custom_call.1} parent=5 // pred_fallthru
        _
      %p165 = scmp.lt.s32.totalorder %s14, 4
      // Predicated region
      $region29: #{tpu_custom_call.1} parent=5 // pred_check
        %p166 = pneg %p165
      $region30: #{tpu_custom_call.1} parent=5 // pred_check_branch
        %168 = sbr.rel (%p166) target = $region32
      $region31: #{tpu_custom_call.1} parent=5 // pred_region
        _
      $region32: #{tpu_custom_call.1} parent=5 // pred_fallthru
        _
      %p169 = scmp.le.s32.totalorder 1, %s14
      %p170 = scmp.lt.s32.totalorder %s14, 5
      %p171 = pnand %p169, %p170
      %p172 = pneg %p171
      // Predicated region
      $region33: #{tpu_custom_call.1} parent=5 // pred_check
        _
      $region34: #{tpu_custom_call.1} parent=5 // pred_check_branch
        %174 = sbr.rel (%p171) target = $region36
      $region35: #{tpu_custom_call.1} parent=5 // pred_region
        %s175 = ssub.s32 %s14, 1
        %p176 = pneg %p47
        %p177 = pneg %p44
        %p178 = pneg %p68
        %p179 = pneg %p65
        %p180 = pneg %p89
        %p181 = pneg %p86
        %p182 = pneg %p110
        %p183 = pneg %p107
        %p184 = pneg %p138
        %p185 = pneg %p135
        %s186 = sand.u32 %s125, 1
        %s187 = scalar_lea.sflag [#allocation5], %s186
        %s188 = sand.u32 %s125, 1
        %s189 = smul.addr %s188, 128
        %s190 = scalar_lea.vmem [#allocation4], %s189
        %s191 = smul.u32 8, %s24
        %p192 = scmp.eq.s32.totalorder %s24, 0
        // Predicated region
        $region37: #{tpu_custom_call.1} parent=35 // pred_check
          %p193 = pneg %p192
        $region38: #{tpu_custom_call.1} parent=35 // pred_check_branch
          %195 = sbr.rel (%p193) target = $region40
        $region39: #{tpu_custom_call.1} parent=35 // pred_region
          %s196 = smul.u32 %s23, 432
          %s197 = scalar_lea.vmem %s0, %s196
          %p199 = scmp.lt.u32.totalorder 18, 8
          %p200 = pneg %p199
          // Predicated region
          $region41: #{tpu_custom_call.1} parent=39 // pred_check
            _
          $region42: #{tpu_custom_call.1} parent=39 // pred_check_branch
            %202 = sbr.rel (%p199) target = $region44
          $region43: #{tpu_custom_call.1} parent=39 // pred_region
            %s235 = sand.u32 18, 7
            %p236 = scmp.eq.s32.totalorder %s235, 0
            %p237 = pneg %p236
            // Predicated region
            $region56: #{tpu_custom_call.1} parent=43 // pred_check
              _
            $region57: #{tpu_custom_call.1} parent=43 // pred_check_branch
              %239 = sbr.rel (%p236) target = $region59
            $region58: #{tpu_custom_call.1} parent=43 // pred_region
              %s240 = sand.u32 18, 7
              %s241 = ssub.s32 18, %s240
              %s242 = scalar_lea.vmem %s197, %s241
              %s243 = ssub.s32 18, %s240
              %s244 = scalar_lea.vmem [#allocation2], %s243
              loop: start=0, step=1, limit=1
              $region60: #{tpu_custom_call.1} parent=58 // loop_pre_header
                _
              $region61: #{tpu_custom_call.1} parent=58 // loop_header
                %s246 = sphi 0, %s250
                %p247 = scmp.ge.s32.totalorder %s246, 1
                %s251 = sphi %s197, %s197
                %s252 = sphi [#allocation2], [#allocation2]
              $region62: #{tpu_custom_call.1} parent=58 // loop_header_branch
                %249 = sbr.rel (%p247) target = $region66
              $region63: #{tpu_custom_call.1} parent=58 // loop_body
                %v253 = vld [vmem:[%s251] sm:$0xff]
                %254 = vst [vmem:[%s252] sm:$0xff] %v253
                %v255 = vld [vmem:[%s251 + $0x8] sm:$0xff]
                %256 = vst [vmem:[%s252 + $0x8] sm:$0xff] %v255
                %v257 = vld [vmem:[%s251 + $0x18] sm:$0xff]
                %258 = vst [vmem:[%s252 + $0x18] sm:$0xff] %v257
                %v259 = vld [vmem:[%s251 + $0x20] sm:$0xff]
                %260 = vst [vmem:[%s252 + $0x20] sm:$0xff] %v259
                %v261 = vld [vmem:[%s251 + $0x30] sm:$0xff]
                %262 = vst [vmem:[%s252 + $0x30] sm:$0xff] %v261
                %v263 = vld [vmem:[%s251 + $0x38] sm:$0xff]
                %264 = vst [vmem:[%s252 + $0x38] sm:$0xff] %v263
                %v265 = vld [vmem:[%s251 + $0x48] sm:$0xff]
                %266 = vst [vmem:[%s252 + $0x48] sm:$0xff] %v265
                %v267 = vld [vmem:[%s251 + $0x50] sm:$0xff]
                %268 = vst [vmem:[%s252 + $0x50] sm:$0xff] %v267
                %v269 = vld [vmem:[%s251 + $0x60] sm:$0xff]
                %270 = vst [vmem:[%s252 + $0x60] sm:$0xff] %v269
                %v271 = vld [vmem:[%s251 + $0x68] sm:$0xff]
                %272 = vst [vmem:[%s252 + $0x68] sm:$0xff] %v271
                %v273 = vld [vmem:[%s251 + $0x78] sm:$0xff]
                %274 = vst [vmem:[%s252 + $0x78] sm:$0xff] %v273
                %v275 = vld [vmem:[%s251 + $0x80] sm:$0xff]
                %276 = vst [vmem:[%s252 + $0x80] sm:$0xff] %v275
                %v277 = vld [vmem:[%s251 + $0x90] sm:$0xff]
                %278 = vst [vmem:[%s252 + $0x90] sm:$0xff] %v277
                %v279 = vld [vmem:[%s251 + $0x98] sm:$0xff]
                %280 = vst [vmem:[%s252 + $0x98] sm:$0xff] %v279
                %v281 = vld [vmem:[%s251 + $0xa8] sm:$0xff]
                %282 = vst [vmem:[%s252 + $0xa8] sm:$0xff] %v281
                %v283 = vld [vmem:[%s251 + $0xb0] sm:$0xff]
                %284 = vst [vmem:[%s252 + $0xb0] sm:$0xff] %v283
                %v285 = vld [vmem:[%s251 + $0xc0] sm:$0xff]
                %286 = vst [vmem:[%s252 + $0xc0] sm:$0xff] %v285
                %v287 = vld [vmem:[%s251 + $0xc8] sm:$0xff]
                %288 = vst [vmem:[%s252 + $0xc8] sm:$0xff] %v287
                %v289 = vld [vmem:[%s251 + $0xd8] sm:$0xff]
                %290 = vst [vmem:[%s252 + $0xd8] sm:$0xff] %v289
                %v291 = vld [vmem:[%s251 + $0xe0] sm:$0xff]
                %292 = vst [vmem:[%s252 + $0xe0] sm:$0xff] %v291
              $region64: #{tpu_custom_call.1} parent=58 // loop_footer
                %s250 = sadd.s32 1, %s246
              $region65: #{tpu_custom_call.1} parent=58 // loop_footer_branch
                %245 = sbr.rel target = $region61
              $region66: #{tpu_custom_call.1} parent=58 // loop_exit
                _
              %s293 = sshllo.u32 0, %s240
              loop: start=0, step=1, limit=1
              $region67: #{tpu_custom_call.1} parent=58 // loop_pre_header
                _
              $region68: #{tpu_custom_call.1} parent=58 // loop_header
                %s295 = sphi 0, %s299
                %p296 = scmp.ge.s32.totalorder %s295, 1
                %s300 = sphi %s242, %s242
                %s301 = sphi %s244, %s244
              $region69: #{tpu_custom_call.1} parent=58 // loop_header_branch
                %298 = sbr.rel (%p296) target = $region73
              $region70: #{tpu_custom_call.1} parent=58 // loop_body
                %v302 = vld [vmem:[%s300] sm:%s293]
                %303 = vst [vmem:[%s301] sm:%s293] %v302
                %v304 = vld [vmem:[%s300 + $0x18] sm:%s293]
                %305 = vst [vmem:[%s301 + $0x18] sm:%s293] %v304
                %v306 = vld [vmem:[%s300 + $0x30] sm:%s293]
                %307 = vst [vmem:[%s301 + $0x30] sm:%s293] %v306
                %v308 = vld [vmem:[%s300 + $0x48] sm:%s293]
                %309 = vst [vmem:[%s301 + $0x48] sm:%s293] %v308
                %v310 = vld [vmem:[%s300 + $0x60] sm:%s293]
                %311 = vst [vmem:[%s301 + $0x60] sm:%s293] %v310
                %v312 = vld [vmem:[%s300 + $0x78] sm:%s293]
                %313 = vst [vmem:[%s301 + $0x78] sm:%s293] %v312
                %v314 = vld [vmem:[%s300 + $0x90] sm:%s293]
                %315 = vst [vmem:[%s301 + $0x90] sm:%s293] %v314
                %v316 = vld [vmem:[%s300 + $0xa8] sm:%s293]
                %317 = vst [vmem:[%s301 + $0xa8] sm:%s293] %v316
                %v318 = vld [vmem:[%s300 + $0xc0] sm:%s293]
                %319 = vst [vmem:[%s301 + $0xc0] sm:%s293] %v318
                %v320 = vld [vmem:[%s300 + $0xd8] sm:%s293]
                %321 = vst [vmem:[%s301 + $0xd8] sm:%s293] %v320
              $region71: #{tpu_custom_call.1} parent=58 // loop_footer
                %s299 = sadd.s32 1, %s295
              $region72: #{tpu_custom_call.1} parent=58 // loop_footer_branch
                %294 = sbr.rel target = $region68
              $region73: #{tpu_custom_call.1} parent=58 // loop_exit
                _
            $region59: #{tpu_custom_call.1} parent=43 // pred_fallthru
              _
          $region44: #{tpu_custom_call.1} parent=39 // pred_fallthru
            _
          // Predicated region
          $region45: #{tpu_custom_call.1} parent=39 // pred_check
            %p203 = pneg %p199
          $region46: #{tpu_custom_call.1} parent=39 // pred_check_branch
            %205 = sbr.rel (%p203) target = $region48
          $region47: #{tpu_custom_call.1} parent=39 // pred_region
            %s206 = sshllo.u32 0, 18
            loop: start=0, step=1, limit=1
            $region49: #{tpu_custom_call.1} parent=47 // loop_pre_header
              _
            $region50: #{tpu_custom_call.1} parent=47 // loop_header
              %s208 = sphi 0, %s212
              %p209 = scmp.ge.s32.totalorder %s208, 1
              %s213 = sphi %s197, %s197
              %s214 = sphi [#allocation2], [#allocation2]
            $region51: #{tpu_custom_call.1} parent=47 // loop_header_branch
              %211 = sbr.rel (%p209) target = $region55
            $region52: #{tpu_custom_call.1} parent=47 // loop_body
              %v215 = vld [vmem:[%s213] sm:%s206]
              %216 = vst [vmem:[%s214] sm:%s206] %v215
              %v217 = vld [vmem:[%s213 + $0x18] sm:%s206]
              %218 = vst [vmem:[%s214 + $0x18] sm:%s206] %v217
              %v219 = vld [vmem:[%s213 + $0x30] sm:%s206]
              %220 = vst [vmem:[%s214 + $0x30] sm:%s206] %v219
              %v221 = vld [vmem:[%s213 + $0x48] sm:%s206]
              %222 = vst [vmem:[%s214 + $0x48] sm:%s206] %v221
              %v223 = vld [vmem:[%s213 + $0x60] sm:%s206]
              %224 = vst [vmem:[%s214 + $0x60] sm:%s206] %v223
              %v225 = vld [vmem:[%s213 + $0x78] sm:%s206]
              %226 = vst [vmem:[%s214 + $0x78] sm:%s206] %v225
              %v227 = vld [vmem:[%s213 + $0x90] sm:%s206]
              %228 = vst [vmem:[%s214 + $0x90] sm:%s206] %v227
              %v229 = vld [vmem:[%s213 + $0xa8] sm:%s206]
              %230 = vst [vmem:[%s214 + $0xa8] sm:%s206] %v229
              %v231 = vld [vmem:[%s213 + $0xc0] sm:%s206]
              %232 = vst [vmem:[%s214 + $0xc0] sm:%s206] %v231
              %v233 = vld [vmem:[%s213 + $0xd8] sm:%s206]
              %234 = vst [vmem:[%s214 + $0xd8] sm:%s206] %v233
            $region53: #{tpu_custom_call.1} parent=47 // loop_footer
              %s212 = sadd.s32 1, %s208
            $region54: #{tpu_custom_call.1} parent=47 // loop_footer_branch
              %207 = sbr.rel target = $region50
            $region55: #{tpu_custom_call.1} parent=47 // loop_exit
              _
          $region48: #{tpu_custom_call.1} parent=39 // pred_fallthru
            _
          // Predicated region
          $region74: #{tpu_custom_call.1} parent=39 // pred_check
            _
          $region75: #{tpu_custom_call.1} parent=39 // pred_check_branch
            %324 = sbr.rel (0) target = $region77
          $region76: #{tpu_custom_call.1} parent=39 // pred_region
            %325 = vsyncadd [#allocation3], 2880
          $region77: #{tpu_custom_call.1} parent=39 // pred_fallthru
            _
        $region40: #{tpu_custom_call.1} parent=35 // pred_fallthru
          _
        %s326 = sand.u32 %s24, 1
        %s327 = smul.u32 %s326, 240
        %s328 = scalar_lea.vmem [#allocation2], %s327
        %s329 = scalar_lea.sflag [#allocation3], %s326
        %s330 = smul.u32 10, 18
        %s331 = smul.u32 %s330, 1
        %s332 = sshll.u32 %s331, 4
        %333 = dma.done %s329, %s332
        %s334 = sadd.s32 %s24, 1
        %p335 = scmp.lt.s32.totalorder %s334, 2
        // Predicated region
        $region78: #{tpu_custom_call.1} parent=35 // pred_check
          %p336 = pneg %p335
        $region79: #{tpu_custom_call.1} parent=35 // pred_check_branch
          %338 = sbr.rel (%p336) target = $region81
        $region80: #{tpu_custom_call.1} parent=35 // pred_region
          %s339 = ssub.s32 1, %s326
          %s340 = smul.u32 %s334, 8
          %s341 = smul.u32 %s340, 24
          %s342 = smul.u32 %s23, 432
          %s343 = sadd.s32 %s341, %s342
          %s344 = scalar_lea.vmem %s0, %s343
          %s345 = smul.u32 %s339, 240
          %s346 = scalar_lea.vmem [#allocation2], %s345
          %s347 = scalar_lea.sflag [#allocation3], %s339
          %p349 = scmp.lt.u32.totalorder 18, 8
          %p350 = pneg %p349
          // Predicated region
          $region82: #{tpu_custom_call.1} parent=80 // pred_check
            _
          $region83: #{tpu_custom_call.1} parent=80 // pred_check_branch
            %352 = sbr.rel (%p349) target = $region85
          $region84: #{tpu_custom_call.1} parent=80 // pred_region
            %s385 = sand.u32 18, 7
            %p386 = scmp.eq.s32.totalorder %s385, 0
            %p387 = pneg %p386
            // Predicated region
            $region97: #{tpu_custom_call.1} parent=84 // pred_check
              _
            $region98: #{tpu_custom_call.1} parent=84 // pred_check_branch
              %389 = sbr.rel (%p386) target = $region100
            $region99: #{tpu_custom_call.1} parent=84 // pred_region
              %s390 = sand.u32 18, 7
              %s391 = ssub.s32 18, %s390
              %s392 = scalar_lea.vmem %s344, %s391
              %s393 = ssub.s32 18, %s390
              %s394 = scalar_lea.vmem %s346, %s393 [#allocation2]
              loop: start=0, step=1, limit=1
              $region101: #{tpu_custom_call.1} parent=99 // loop_pre_header
                _
              $region102: #{tpu_custom_call.1} parent=99 // loop_header
                %s396 = sphi 0, %s400
                %p397 = scmp.ge.s32.totalorder %s396, 1
                %s401 = sphi %s344, %s344
                %s402 = sphi %s346, %s346
              $region103: #{tpu_custom_call.1} parent=99 // loop_header_branch
                %399 = sbr.rel (%p397) target = $region107
              $region104: #{tpu_custom_call.1} parent=99 // loop_body
                %v403 = vld [vmem:[%s401] sm:$0xff]
                %404 = vst [vmem:[%s402] sm:$0xff] %v403
                %v405 = vld [vmem:[%s401 + $0x8] sm:$0xff]
                %406 = vst [vmem:[%s402 + $0x8] sm:$0xff] %v405
                %v407 = vld [vmem:[%s401 + $0x18] sm:$0xff]
                %408 = vst [vmem:[%s402 + $0x18] sm:$0xff] %v407
                %v409 = vld [vmem:[%s401 + $0x20] sm:$0xff]
                %410 = vst [vmem:[%s402 + $0x20] sm:$0xff] %v409
                %v411 = vld [vmem:[%s401 + $0x30] sm:$0xff]
                %412 = vst [vmem:[%s402 + $0x30] sm:$0xff] %v411
                %v413 = vld [vmem:[%s401 + $0x38] sm:$0xff]
                %414 = vst [vmem:[%s402 + $0x38] sm:$0xff] %v413
                %v415 = vld [vmem:[%s401 + $0x48] sm:$0xff]
                %416 = vst [vmem:[%s402 + $0x48] sm:$0xff] %v415
                %v417 = vld [vmem:[%s401 + $0x50] sm:$0xff]
                %418 = vst [vmem:[%s402 + $0x50] sm:$0xff] %v417
                %v419 = vld [vmem:[%s401 + $0x60] sm:$0xff]
                %420 = vst [vmem:[%s402 + $0x60] sm:$0xff] %v419
                %v421 = vld [vmem:[%s401 + $0x68] sm:$0xff]
                %422 = vst [vmem:[%s402 + $0x68] sm:$0xff] %v421
                %v423 = vld [vmem:[%s401 + $0x78] sm:$0xff]
                %424 = vst [vmem:[%s402 + $0x78] sm:$0xff] %v423
                %v425 = vld [vmem:[%s401 + $0x80] sm:$0xff]
                %426 = vst [vmem:[%s402 + $0x80] sm:$0xff] %v425
                %v427 = vld [vmem:[%s401 + $0x90] sm:$0xff]
                %428 = vst [vmem:[%s402 + $0x90] sm:$0xff] %v427
                %v429 = vld [vmem:[%s401 + $0x98] sm:$0xff]
                %430 = vst [vmem:[%s402 + $0x98] sm:$0xff] %v429
                %v431 = vld [vmem:[%s401 + $0xa8] sm:$0xff]
                %432 = vst [vmem:[%s402 + $0xa8] sm:$0xff] %v431
                %v433 = vld [vmem:[%s401 + $0xb0] sm:$0xff]
                %434 = vst [vmem:[%s402 + $0xb0] sm:$0xff] %v433
                %v435 = vld [vmem:[%s401 + $0xc0] sm:$0xff]
                %436 = vst [vmem:[%s402 + $0xc0] sm:$0xff] %v435
                %v437 = vld [vmem:[%s401 + $0xc8] sm:$0xff]
                %438 = vst [vmem:[%s402 + $0xc8] sm:$0xff] %v437
                %v439 = vld [vmem:[%s401 + $0xd8] sm:$0xff]
                %440 = vst [vmem:[%s402 + $0xd8] sm:$0xff] %v439
                %v441 = vld [vmem:[%s401 + $0xe0] sm:$0xff]
                %442 = vst [vmem:[%s402 + $0xe0] sm:$0xff] %v441
              $region105: #{tpu_custom_call.1} parent=99 // loop_footer
                %s400 = sadd.s32 1, %s396
              $region106: #{tpu_custom_call.1} parent=99 // loop_footer_branch
                %395 = sbr.rel target = $region102
              $region107: #{tpu_custom_call.1} parent=99 // loop_exit
                _
              %s443 = sshllo.u32 0, %s390
              loop: start=0, step=1, limit=1
              $region108: #{tpu_custom_call.1} parent=99 // loop_pre_header
                _
              $region109: #{tpu_custom_call.1} parent=99 // loop_header
                %s445 = sphi 0, %s449
                %p446 = scmp.ge.s32.totalorder %s445, 1
                %s450 = sphi %s392, %s392
                %s451 = sphi %s394, %s394
              $region110: #{tpu_custom_call.1} parent=99 // loop_header_branch
                %448 = sbr.rel (%p446) target = $region114
              $region111: #{tpu_custom_call.1} parent=99 // loop_body
                %v452 = vld [vmem:[%s450] sm:%s443]
                %453 = vst [vmem:[%s451] sm:%s443] %v452
                %v454 = vld [vmem:[%s450 + $0x18] sm:%s443]
                %455 = vst [vmem:[%s451 + $0x18] sm:%s443] %v454
                %v456 = vld [vmem:[%s450 + $0x30] sm:%s443]
                %457 = vst [vmem:[%s451 + $0x30] sm:%s443] %v456
                %v458 = vld [vmem:[%s450 + $0x48] sm:%s443]
                %459 = vst [vmem:[%s451 + $0x48] sm:%s443] %v458
                %v460 = vld [vmem:[%s450 + $0x60] sm:%s443]
                %461 = vst [vmem:[%s451 + $0x60] sm:%s443] %v460
                %v462 = vld [vmem:[%s450 + $0x78] sm:%s443]
                %463 = vst [vmem:[%s451 + $0x78] sm:%s443] %v462
                %v464 = vld [vmem:[%s450 + $0x90] sm:%s443]
                %465 = vst [vmem:[%s451 + $0x90] sm:%s443] %v464
                %v466 = vld [vmem:[%s450 + $0xa8] sm:%s443]
                %467 = vst [vmem:[%s451 + $0xa8] sm:%s443] %v466
                %v468 = vld [vmem:[%s450 + $0xc0] sm:%s443]
                %469 = vst [vmem:[%s451 + $0xc0] sm:%s443] %v468
                %v470 = vld [vmem:[%s450 + $0xd8] sm:%s443]
                %471 = vst [vmem:[%s451 + $0xd8] sm:%s443] %v470
              $region112: #{tpu_custom_call.1} parent=99 // loop_footer
                %s449 = sadd.s32 1, %s445
              $region113: #{tpu_custom_call.1} parent=99 // loop_footer_branch
                %444 = sbr.rel target = $region109
              $region114: #{tpu_custom_call.1} parent=99 // loop_exit
                _
            $region100: #{tpu_custom_call.1} parent=84 // pred_fallthru
              _
          $region85: #{tpu_custom_call.1} parent=80 // pred_fallthru
            _
          // Predicated region
          $region86: #{tpu_custom_call.1} parent=80 // pred_check
            %p353 = pneg %p349
          $region87: #{tpu_custom_call.1} parent=80 // pred_check_branch
            %355 = sbr.rel (%p353) target = $region89
          $region88: #{tpu_custom_call.1} parent=80 // pred_region
            %s356 = sshllo.u32 0, 18
            loop: start=0, step=1, limit=1
            $region90: #{tpu_custom_call.1} parent=88 // loop_pre_header
              _
            $region91: #{tpu_custom_call.1} parent=88 // loop_header
              %s358 = sphi 0, %s362
              %p359 = scmp.ge.s32.totalorder %s358, 1
              %s363 = sphi %s344, %s344
              %s364 = sphi %s346, %s346
            $region92: #{tpu_custom_call.1} parent=88 // loop_header_branch
              %361 = sbr.rel (%p359) target = $region96
            $region93: #{tpu_custom_call.1} parent=88 // loop_body
              %v365 = vld [vmem:[%s363] sm:%s356]
              %366 = vst [vmem:[%s364] sm:%s356] %v365
              %v367 = vld [vmem:[%s363 + $0x18] sm:%s356]
              %368 = vst [vmem:[%s364 + $0x18] sm:%s356] %v367
              %v369 = vld [vmem:[%s363 + $0x30] sm:%s356]
              %370 = vst [vmem:[%s364 + $0x30] sm:%s356] %v369
              %v371 = vld [vmem:[%s363 + $0x48] sm:%s356]
              %372 = vst [vmem:[%s364 + $0x48] sm:%s356] %v371
              %v373 = vld [vmem:[%s363 + $0x60] sm:%s356]
              %374 = vst [vmem:[%s364 + $0x60] sm:%s356] %v373
              %v375 = vld [vmem:[%s363 + $0x78] sm:%s356]
              %376 = vst [vmem:[%s364 + $0x78] sm:%s356] %v375
              %v377 = vld [vmem:[%s363 + $0x90] sm:%s356]
              %378 = vst [vmem:[%s364 + $0x90] sm:%s356] %v377
              %v379 = vld [vmem:[%s363 + $0xa8] sm:%s356]
              %380 = vst [vmem:[%s364 + $0xa8] sm:%s356] %v379
              %v381 = vld [vmem:[%s363 + $0xc0] sm:%s356]
              %382 = vst [vmem:[%s364 + $0xc0] sm:%s356] %v381
              %v383 = vld [vmem:[%s363 + $0xd8] sm:%s356]
              %384 = vst [vmem:[%s364 + $0xd8] sm:%s356] %v383
            $region94: #{tpu_custom_call.1} parent=88 // loop_footer
              %s362 = sadd.s32 1, %s358
            $region95: #{tpu_custom_call.1} parent=88 // loop_footer_branch
              %357 = sbr.rel target = $region91
            $region96: #{tpu_custom_call.1} parent=88 // loop_exit
              _
          $region89: #{tpu_custom_call.1} parent=80 // pred_fallthru
            _
          // Predicated region
          $region115: #{tpu_custom_call.1} parent=80 // pred_check
            _
          $region116: #{tpu_custom_call.1} parent=80 // pred_check_branch
            %474 = sbr.rel (0) target = $region118
          $region117: #{tpu_custom_call.1} parent=80 // pred_region
            %475 = vsyncadd %s347, 2880
          $region118: #{tpu_custom_call.1} parent=80 // pred_fallthru
            _
        $region81: #{tpu_custom_call.1} parent=35 // pred_fallthru
          _
        %v476 = vld [vmem:[%s328] sm:$0xff]
        %v477 = vld [vmem:[%s328 + $0x8] sm:$0xff]
        %v478 = vld [vmem:[%s328 + $0x10] sm:$0x3]
        %v479 = vld [vmem:[%s328 + $0x18] sm:$0xff]
        %v480 = vld [vmem:[%s328 + $0x20] sm:$0xff]
        %v481 = vld [vmem:[%s328 + $0x28] sm:$0x3]
        %v482 = vld [vmem:[%s328 + $0x30] sm:$0xff]
        %v483 = vld [vmem:[%s328 + $0x38] sm:$0xff]
        %v484 = vld [vmem:[%s328 + $0x40] sm:$0x3]
        %v485 = vld [vmem:[%s328 + $0x48] sm:$0xff]
        %v486 = vld [vmem:[%s328 + $0x50] sm:$0xff]
        %v487 = vld [vmem:[%s328 + $0x58] sm:$0x3]
        %v488 = vld [vmem:[%s328 + $0x60] sm:$0xff]
        %v489 = vld [vmem:[%s328 + $0x68] sm:$0xff]
        %v490 = vld [vmem:[%s328 + $0x70] sm:$0x3]
        %v491 = vld [vmem:[%s328 + $0x78] sm:$0xff]
        %v492 = vld [vmem:[%s328 + $0x80] sm:$0xff]
        %v493 = vld [vmem:[%s328 + $0x88] sm:$0x3]
        %v494 = vld [vmem:[%s328 + $0x90] sm:$0xff]
        %v495 = vld [vmem:[%s328 + $0x98] sm:$0xff]
        %v496 = vld [vmem:[%s328 + $0xa0] sm:$0x3]
        %v497 = vld [vmem:[%s328 + $0xa8] sm:$0xff]
        %v498 = vld [vmem:[%s328 + $0xb0] sm:$0xff]
        %v499 = vld [vmem:[%s328 + $0xb8] sm:$0x3]
        %v500 = vld [vmem:[%s328 + $0xc0] sm:$0xff]
        %v501 = vld [vmem:[%s328 + $0xc8] sm:$0xff]
        %v502 = vld [vmem:[%s328 + $0xd0] sm:$0x3]
        %v503 = vld [vmem:[%s328 + $0xd8] sm:$0xff]
        %v504 = vld [vmem:[%s328 + $0xe0] sm:$0xff]
        %v505 = vld [vmem:[%s328 + $0xe8] sm:$0x3]
        %v506 = vld [vmem:[%s1] sm:$0x7]
        %v507 = vld [vmem:[%s1 + $0x4] sm:$0x7]
        %v508 = vld [vmem:[%s1 + $0x8] sm:$0x7]
        %v509 = vlaneseq
        %v510 = vshrl.u32 %v509, 7
        %v511 = vsub.s32 0, %v510
        %v512 = vrot.slane %v506, %v511
        %v513 = vmul.f32 %v476, %v512
        %v514 = vmul.f32 %v477, %v512
        %v515 = vmul.f32 %v479, %v512
        %v516 = vmul.f32 %v480, %v512
        %v517 = vmul.f32 %v482, %v512
        %v518 = vmul.f32 %v483, %v512
        %v519 = vmul.f32 %v485, %v512
        %v520 = vmul.f32 %v486, %v512
        %v521 = vmul.f32 %v488, %v512
        %v522 = vmul.f32 %v489, %v512
        %v523 = vmul.f32 %v491, %v512
        %v524 = vmul.f32 %v492, %v512
        %v525 = vmul.f32 %v494, %v512
        %v526 = vmul.f32 %v495, %v512
        %v527 = vmul.f32 %v497, %v512
        %v528 = vmul.f32 %v498, %v512
        %v529 = vadd.f32 %v513, 0.0
        %v530 = vadd.f32 %v514, 0.0
        %v531 = vadd.f32 %v515, 0.0
        %v532 = vadd.f32 %v516, 0.0
        %v533 = vadd.f32 %v517, 0.0
        %v534 = vadd.f32 %v518, 0.0
        %v535 = vadd.f32 %v519, 0.0
        %v536 = vadd.f32 %v520, 0.0
        %v537 = vadd.f32 %v521, 0.0
        %v538 = vadd.f32 %v522, 0.0
        %v539 = vadd.f32 %v523, 0.0
        %v540 = vadd.f32 %v524, 0.0
        %v541 = vadd.f32 %v525, 0.0
        %v542 = vadd.f32 %v526, 0.0
        %v543 = vadd.f32 %v527, 0.0
        %v544 = vadd.f32 %v528, 0.0
        %v545 = vlaneseq
        %v546 = vshrl.u32 %v545, 7
        %v547 = vsub.s32 1, %v546
        %v548 = vrot.slane %v506, %v547
        %v549 = vmul.f32 %v476, %v548
        %v550 = vmul.f32 %v477, %v548
        %v551 = vmul.f32 %v478, %v548
        %v552 = vmul.f32 %v479, %v548
        %v553 = vmul.f32 %v480, %v548
        %v554 = vmul.f32 %v481, %v548
        %v555 = vmul.f32 %v482, %v548
        %v556 = vmul.f32 %v483, %v548
        %v557 = vmul.f32 %v484, %v548
        %v558 = vmul.f32 %v485, %v548
        %v559 = vmul.f32 %v486, %v548
        %v560 = vmul.f32 %v487, %v548
        %v561 = vmul.f32 %v488, %v548
        %v562 = vmul.f32 %v489, %v548
        %v563 = vmul.f32 %v490, %v548
        %v564 = vmul.f32 %v491, %v548
        %v565 = vmul.f32 %v492, %v548
        %v566 = vmul.f32 %v493, %v548
        %v567 = vmul.f32 %v494, %v548
        %v568 = vmul.f32 %v495, %v548
        %v569 = vmul.f32 %v496, %v548
        %v570 = vmul.f32 %v497, %v548
        %v571 = vmul.f32 %v498, %v548
        %v572 = vmul.f32 %v499, %v548
        %vm597 = vcmask 1046528
        %v598 = vrot.slane %v549, 1
        %v599 = vrot.slane %v550, 1
        %v600 = vsel %vm597, %v598, %v599
        %v601 = vrot.slane %v551, 1
        %v602 = vsel %vm597, %v599, %v601
        %v603 = vrot.slane %v552, 1
        %v604 = vrot.slane %v553, 1
        %v605 = vsel %vm597, %v603, %v604
        %v606 = vrot.slane %v554, 1
        %v607 = vsel %vm597, %v604, %v606
        %v608 = vrot.slane %v555, 1
        %v609 = vrot.slane %v556, 1
        %v610 = vsel %vm597, %v608, %v609
        %v611 = vrot.slane %v557, 1
        %v612 = vsel %vm597, %v609, %v611
        %v613 = vrot.slane %v558, 1
        %v614 = vrot.slane %v559, 1
        %v615 = vsel %vm597, %v613, %v614
        %v616 = vrot.slane %v560, 1
        %v617 = vsel %vm597, %v614, %v616
        %v618 = vrot.slane %v561, 1
        %v619 = vrot.slane %v562, 1
        %v620 = vsel %vm597, %v618, %v619
        %v621 = vrot.slane %v563, 1
        %v622 = vsel %vm597, %v619, %v621
        %v623 = vrot.slane %v564, 1
        %v624 = vrot.slane %v565, 1
        %v625 = vsel %vm597, %v623, %v624
        %v626 = vrot.slane %v566, 1
        %v627 = vsel %vm597, %v624, %v626
        %v628 = vrot.slane %v567, 1
        %v629 = vrot.slane %v568, 1
        %v630 = vsel %vm597, %v628, %v629
        %v631 = vrot.slane %v569, 1
        %v632 = vsel %vm597, %v629, %v631
        %v633 = vrot.slane %v570, 1
        %v634 = vrot.slane %v571, 1
        %v635 = vsel %vm597, %v633, %v634
        %v636 = vrot.slane %v572, 1
        %v637 = vsel %vm597, %v634, %v636
        %v654 = vadd.f32 %v529, %v600
        %v655 = vadd.f32 %v530, %v602
        %v656 = vadd.f32 %v531, %v605
        %v657 = vadd.f32 %v532, %v607
        %v658 = vadd.f32 %v533, %v610
        %v659 = vadd.f32 %v534, %v612
        %v660 = vadd.f32 %v535, %v615
        %v661 = vadd.f32 %v536, %v617
        %v662 = vadd.f32 %v537, %v620
        %v663 = vadd.f32 %v538, %v622
        %v664 = vadd.f32 %v539, %v625
        %v665 = vadd.f32 %v540, %v627
        %v666 = vadd.f32 %v541, %v630
        %v667 = vadd.f32 %v542, %v632
        %v668 = vadd.f32 %v543, %v635
        %v669 = vadd.f32 %v544, %v637
        %v670 = vlaneseq
        %v671 = vshrl.u32 %v670, 7
        %v672 = vsub.s32 2, %v671
        %v673 = vrot.slane %v506, %v672
        %v674 = vmul.f32 %v476, %v673
        %v675 = vmul.f32 %v477, %v673
        %v676 = vmul.f32 %v478, %v673
        %v677 = vmul.f32 %v479, %v673
        %v678 = vmul.f32 %v480, %v673
        %v679 = vmul.f32 %v481, %v673
        %v680 = vmul.f32 %v482, %v673
        %v681 = vmul.f32 %v483, %v673
        %v682 = vmul.f32 %v484, %v673
        %v683 = vmul.f32 %v485, %v673
        %v684 = vmul.f32 %v486, %v673
        %v685 = vmul.f32 %v487, %v673
        %v686 = vmul.f32 %v488, %v673
        %v687 = vmul.f32 %v489, %v673
        %v688 = vmul.f32 %v490, %v673
        %v689 = vmul.f32 %v491, %v673
        %v690 = vmul.f32 %v492, %v673
        %v691 = vmul.f32 %v493, %v673
        %v692 = vmul.f32 %v494, %v673
        %v693 = vmul.f32 %v495, %v673
        %v694 = vmul.f32 %v496, %v673
        %v695 = vmul.f32 %v497, %v673
        %v696 = vmul.f32 %v498, %v673
        %v697 = vmul.f32 %v499, %v673
        %vm722 = vcmask 1045504
        %v723 = vrot.slane %v674, 2
        %v724 = vrot.slane %v675, 2
        %v725 = vsel %vm722, %v723, %v724
        %v726 = vrot.slane %v676, 2
        %v727 = vsel %vm722, %v724, %v726
        %v728 = vrot.slane %v677, 2
        %v729 = vrot.slane %v678, 2
        %v730 = vsel %vm722, %v728, %v729
        %v731 = vrot.slane %v679, 2
        %v732 = vsel %vm722, %v729, %v731
        %v733 = vrot.slane %v680, 2
        %v734 = vrot.slane %v681, 2
        %v735 = vsel %vm722, %v733, %v734
        %v736 = vrot.slane %v682, 2
        %v737 = vsel %vm722, %v734, %v736
        %v738 = vrot.slane %v683, 2
        %v739 = vrot.slane %v684, 2
        %v740 = vsel %vm722, %v738, %v739
        %v741 = vrot.slane %v685, 2
        %v742 = vsel %vm722, %v739, %v741
        %v743 = vrot.slane %v686, 2
        %v744 = vrot.slane %v687, 2
        %v745 = vsel %vm722, %v743, %v744
        %v746 = vrot.slane %v688, 2
        %v747 = vsel %vm722, %v744, %v746
        %v748 = vrot.slane %v689, 2
        %v749 = vrot.slane %v690, 2
        %v750 = vsel %vm722, %v748, %v749
        %v751 = vrot.slane %v691, 2
        %v752 = vsel %vm722, %v749, %v751
        %v753 = vrot.slane %v692, 2
        %v754 = vrot.slane %v693, 2
        %v755 = vsel %vm722, %v753, %v754
        %v756 = vrot.slane %v694, 2
        %v757 = vsel %vm722, %v754, %v756
        %v758 = vrot.slane %v695, 2
        %v759 = vrot.slane %v696, 2
        %v760 = vsel %vm722, %v758, %v759
        %v761 = vrot.slane %v697, 2
        %v762 = vsel %vm722, %v759, %v761
        %v779 = vadd.f32 %v654, %v725
        %v780 = vadd.f32 %v655, %v727
        %v781 = vadd.f32 %v656, %v730
        %v782 = vadd.f32 %v657, %v732
        %v783 = vadd.f32 %v658, %v735
        %v784 = vadd.f32 %v659, %v737
        %v785 = vadd.f32 %v660, %v740
        %v786 = vadd.f32 %v661, %v742
        %v787 = vadd.f32 %v662, %v745
        %v788 = vadd.f32 %v663, %v747
        %v789 = vadd.f32 %v664, %v750
        %v790 = vadd.f32 %v665, %v752
        %v791 = vadd.f32 %v666, %v755
        %v792 = vadd.f32 %v667, %v757
        %v793 = vadd.f32 %v668, %v760
        %v794 = vadd.f32 %v669, %v762
        %v795 = vlaneseq
        %v796 = vshrl.u32 %v795, 7
        %v797 = vsub.s32 0, %v796
        %v798 = vrot.slane %v507, %v797
        %v799 = vmul.f32 %v479, %v798
        %v800 = vmul.f32 %v480, %v798
        %v801 = vmul.f32 %v482, %v798
        %v802 = vmul.f32 %v483, %v798
        %v803 = vmul.f32 %v485, %v798
        %v804 = vmul.f32 %v486, %v798
        %v805 = vmul.f32 %v488, %v798
        %v806 = vmul.f32 %v489, %v798
        %v807 = vmul.f32 %v491, %v798
        %v808 = vmul.f32 %v492, %v798
        %v809 = vmul.f32 %v494, %v798
        %v810 = vmul.f32 %v495, %v798
        %v811 = vmul.f32 %v497, %v798
        %v812 = vmul.f32 %v498, %v798
        %v813 = vmul.f32 %v500, %v798
        %v814 = vmul.f32 %v501, %v798
        %v815 = vadd.f32 %v779, %v799
        %v816 = vadd.f32 %v780, %v800
        %v817 = vadd.f32 %v781, %v801
        %v818 = vadd.f32 %v782, %v802
        %v819 = vadd.f32 %v783, %v803
        %v820 = vadd.f32 %v784, %v804
        %v821 = vadd.f32 %v785, %v805
        %v822 = vadd.f32 %v786, %v806
        %v823 = vadd.f32 %v787, %v807
        %v824 = vadd.f32 %v788, %v808
        %v825 = vadd.f32 %v789, %v809
        %v826 = vadd.f32 %v790, %v810
        %v827 = vadd.f32 %v791, %v811
        %v828 = vadd.f32 %v792, %v812
        %v829 = vadd.f32 %v793, %v813
        %v830 = vadd.f32 %v794, %v814
        %v831 = vlaneseq
        %v832 = vshrl.u32 %v831, 7
        %v833 = vsub.s32 1, %v832
        %v834 = vrot.slane %v507, %v833
        %v835 = vmul.f32 %v479, %v834
        %v836 = vmul.f32 %v480, %v834
        %v837 = vmul.f32 %v481, %v834
        %v838 = vmul.f32 %v482, %v834
        %v839 = vmul.f32 %v483, %v834
        %v840 = vmul.f32 %v484, %v834
        %v841 = vmul.f32 %v485, %v834
        %v842 = vmul.f32 %v486, %v834
        %v843 = vmul.f32 %v487, %v834
        %v844 = vmul.f32 %v488, %v834
        %v845 = vmul.f32 %v489, %v834
        %v846 = vmul.f32 %v490, %v834
        %v847 = vmul.f32 %v491, %v834
        %v848 = vmul.f32 %v492, %v834
        %v849 = vmul.f32 %v493, %v834
        %v850 = vmul.f32 %v494, %v834
        %v851 = vmul.f32 %v495, %v834
        %v852 = vmul.f32 %v496, %v834
        %v853 = vmul.f32 %v497, %v834
        %v854 = vmul.f32 %v498, %v834
        %v855 = vmul.f32 %v499, %v834
        %v856 = vmul.f32 %v500, %v834
        %v857 = vmul.f32 %v501, %v834
        %v858 = vmul.f32 %v502, %v834
        %v883 = vrot.slane %v835, 1
        %v884 = vrot.slane %v836, 1
        %v885 = vsel %vm597, %v883, %v884
        %v886 = vrot.slane %v837, 1
        %v887 = vsel %vm597, %v884, %v886
        %v888 = vrot.slane %v838, 1
        %v889 = vrot.slane %v839, 1
        %v890 = vsel %vm597, %v888, %v889
        %v891 = vrot.slane %v840, 1
        %v892 = vsel %vm597, %v889, %v891
        %v893 = vrot.slane %v841, 1
        %v894 = vrot.slane %v842, 1
        %v895 = vsel %vm597, %v893, %v894
        %v896 = vrot.slane %v843, 1
        %v897 = vsel %vm597, %v894, %v896
        %v898 = vrot.slane %v844, 1
        %v899 = vrot.slane %v845, 1
        %v900 = vsel %vm597, %v898, %v899
        %v901 = vrot.slane %v846, 1
        %v902 = vsel %vm597, %v899, %v901
        %v903 = vrot.slane %v847, 1
        %v904 = vrot.slane %v848, 1
        %v905 = vsel %vm597, %v903, %v904
        %v906 = vrot.slane %v849, 1
        %v907 = vsel %vm597, %v904, %v906
        %v908 = vrot.slane %v850, 1
        %v909 = vrot.slane %v851, 1
        %v910 = vsel %vm597, %v908, %v909
        %v911 = vrot.slane %v852, 1
        %v912 = vsel %vm597, %v909, %v911
        %v913 = vrot.slane %v853, 1
        %v914 = vrot.slane %v854, 1
        %v915 = vsel %vm597, %v913, %v914
        %v916 = vrot.slane %v855, 1
        %v917 = vsel %vm597, %v914, %v916
        %v918 = vrot.slane %v856, 1
        %v919 = vrot.slane %v857, 1
        %v920 = vsel %vm597, %v918, %v919
        %v921 = vrot.slane %v858, 1
        %v922 = vsel %vm597, %v919, %v921
        %v939 = vadd.f32 %v815, %v885
        %v940 = vadd.f32 %v816, %v887
        %v941 = vadd.f32 %v817, %v890
        %v942 = vadd.f32 %v818, %v892
        %v943 = vadd.f32 %v819, %v895
        %v944 = vadd.f32 %v820, %v897
        %v945 = vadd.f32 %v821, %v900
        %v946 = vadd.f32 %v822, %v902
        %v947 = vadd.f32 %v823, %v905
        %v948 = vadd.f32 %v824, %v907
        %v949 = vadd.f32 %v825, %v910
        %v950 = vadd.f32 %v826, %v912
        %v951 = vadd.f32 %v827, %v915
        %v952 = vadd.f32 %v828, %v917
        %v953 = vadd.f32 %v829, %v920
        %v954 = vadd.f32 %v830, %v922
        %v955 = vlaneseq
        %v956 = vshrl.u32 %v955, 7
        %v957 = vsub.s32 2, %v956
        %v958 = vrot.slane %v507, %v957
        %v959 = vmul.f32 %v479, %v958
        %v960 = vmul.f32 %v480, %v958
        %v961 = vmul.f32 %v481, %v958
        %v962 = vmul.f32 %v482, %v958
        %v963 = vmul.f32 %v483, %v958
        %v964 = vmul.f32 %v484, %v958
        %v965 = vmul.f32 %v485, %v958
        %v966 = vmul.f32 %v486, %v958
        %v967 = vmul.f32 %v487, %v958
        %v968 = vmul.f32 %v488, %v958
        %v969 = vmul.f32 %v489, %v958
        %v970 = vmul.f32 %v490, %v958
        %v971 = vmul.f32 %v491, %v958
        %v972 = vmul.f32 %v492, %v958
        %v973 = vmul.f32 %v493, %v958
        %v974 = vmul.f32 %v494, %v958
        %v975 = vmul.f32 %v495, %v958
        %v976 = vmul.f32 %v496, %v958
        %v977 = vmul.f32 %v497, %v958
        %v978 = vmul.f32 %v498, %v958
        %v979 = vmul.f32 %v499, %v958
        %v980 = vmul.f32 %v500, %v958
        %v981 = vmul.f32 %v501, %v958
        %v982 = vmul.f32 %v502, %v958
        %v1007 = vrot.slane %v959, 2
        %v1008 = vrot.slane %v960, 2
        %v1009 = vsel %vm722, %v1007, %v1008
        %v1010 = vrot.slane %v961, 2
        %v1011 = vsel %vm722, %v1008, %v1010
        %v1012 = vrot.slane %v962, 2
        %v1013 = vrot.slane %v963, 2
        %v1014 = vsel %vm722, %v1012, %v1013
        %v1015 = vrot.slane %v964, 2
        %v1016 = vsel %vm722, %v1013, %v1015
        %v1017 = vrot.slane %v965, 2
        %v1018 = vrot.slane %v966, 2
        %v1019 = vsel %vm722, %v1017, %v1018
        %v1020 = vrot.slane %v967, 2
        %v1021 = vsel %vm722, %v1018, %v1020
        %v1022 = vrot.slane %v968, 2
        %v1023 = vrot.slane %v969, 2
        %v1024 = vsel %vm722, %v1022, %v1023
        %v1025 = vrot.slane %v970, 2
        %v1026 = vsel %vm722, %v1023, %v1025
        %v1027 = vrot.slane %v971, 2
        %v1028 = vrot.slane %v972, 2
        %v1029 = vsel %vm722, %v1027, %v1028
        %v1030 = vrot.slane %v973, 2
        %v1031 = vsel %vm722, %v1028, %v1030
        %v1032 = vrot.slane %v974, 2
        %v1033 = vrot.slane %v975, 2
        %v1034 = vsel %vm722, %v1032, %v1033
        %v1035 = vrot.slane %v976, 2
        %v1036 = vsel %vm722, %v1033, %v1035
        %v1037 = vrot.slane %v977, 2
        %v1038 = vrot.slane %v978, 2
        %v1039 = vsel %vm722, %v1037, %v1038
        %v1040 = vrot.slane %v979, 2
        %v1041 = vsel %vm722, %v1038, %v1040
        %v1042 = vrot.slane %v980, 2
        %v1043 = vrot.slane %v981, 2
        %v1044 = vsel %vm722, %v1042, %v1043
        %v1045 = vrot.slane %v982, 2
        %v1046 = vsel %vm722, %v1043, %v1045
        %v1063 = vadd.f32 %v939, %v1009
        %v1064 = vadd.f32 %v940, %v1011
        %v1065 = vadd.f32 %v941, %v1014
        %v1066 = vadd.f32 %v942, %v1016
        %v1067 = vadd.f32 %v943, %v1019
        %v1068 = vadd.f32 %v944, %v1021
        %v1069 = vadd.f32 %v945, %v1024
        %v1070 = vadd.f32 %v946, %v1026
        %v1071 = vadd.f32 %v947, %v1029
        %v1072 = vadd.f32 %v948, %v1031
        %v1073 = vadd.f32 %v949, %v1034
        %v1074 = vadd.f32 %v950, %v1036
        %v1075 = vadd.f32 %v951, %v1039
        %v1076 = vadd.f32 %v952, %v1041
        %v1077 = vadd.f32 %v953, %v1044
        %v1078 = vadd.f32 %v954, %v1046
        %v1079 = vlaneseq
        %v1080 = vshrl.u32 %v1079, 7
        %v1081 = vsub.s32 0, %v1080
        %v1082 = vrot.slane %v508, %v1081
        %v1083 = vmul.f32 %v482, %v1082
        %v1084 = vmul.f32 %v483, %v1082
        %v1085 = vmul.f32 %v485, %v1082
        %v1086 = vmul.f32 %v486, %v1082
        %v1087 = vmul.f32 %v488, %v1082
        %v1088 = vmul.f32 %v489, %v1082
        %v1089 = vmul.f32 %v491, %v1082
        %v1090 = vmul.f32 %v492, %v1082
        %v1091 = vmul.f32 %v494, %v1082
        %v1092 = vmul.f32 %v495, %v1082
        %v1093 = vmul.f32 %v497, %v1082
        %v1094 = vmul.f32 %v498, %v1082
        %v1095 = vmul.f32 %v500, %v1082
        %v1096 = vmul.f32 %v501, %v1082
        %v1097 = vmul.f32 %v503, %v1082
        %v1098 = vmul.f32 %v504, %v1082
        %v1099 = vadd.f32 %v1063, %v1083
        %v1100 = vadd.f32 %v1064, %v1084
        %v1101 = vadd.f32 %v1065, %v1085
        %v1102 = vadd.f32 %v1066, %v1086
        %v1103 = vadd.f32 %v1067, %v1087
        %v1104 = vadd.f32 %v1068, %v1088
        %v1105 = vadd.f32 %v1069, %v1089
        %v1106 = vadd.f32 %v1070, %v1090
        %v1107 = vadd.f32 %v1071, %v1091
        %v1108 = vadd.f32 %v1072, %v1092
        %v1109 = vadd.f32 %v1073, %v1093
        %v1110 = vadd.f32 %v1074, %v1094
        %v1111 = vadd.f32 %v1075, %v1095
        %v1112 = vadd.f32 %v1076, %v1096
        %v1113 = vadd.f32 %v1077, %v1097
        %v1114 = vadd.f32 %v1078, %v1098
        %v1115 = vlaneseq
        %v1116 = vshrl.u32 %v1115, 7
        %v1117 = vsub.s32 1, %v1116
        %v1118 = vrot.slane %v508, %v1117
        %v1119 = vmul.f32 %v482, %v1118
        %v1120 = vmul.f32 %v483, %v1118
        %v1121 = vmul.f32 %v484, %v1118
        %v1122 = vmul.f32 %v485, %v1118
        %v1123 = vmul.f32 %v486, %v1118
        %v1124 = vmul.f32 %v487, %v1118
        %v1125 = vmul.f32 %v488, %v1118
        %v1126 = vmul.f32 %v489, %v1118
        %v1127 = vmul.f32 %v490, %v1118
        %v1128 = vmul.f32 %v491, %v1118
        %v1129 = vmul.f32 %v492, %v1118
        %v1130 = vmul.f32 %v493, %v1118
        %v1131 = vmul.f32 %v494, %v1118
        %v1132 = vmul.f32 %v495, %v1118
        %v1133 = vmul.f32 %v496, %v1118
        %v1134 = vmul.f32 %v497, %v1118
        %v1135 = vmul.f32 %v498, %v1118
        %v1136 = vmul.f32 %v499, %v1118
        %v1137 = vmul.f32 %v500, %v1118
        %v1138 = vmul.f32 %v501, %v1118
        %v1139 = vmul.f32 %v502, %v1118
        %v1140 = vmul.f32 %v503, %v1118
        %v1141 = vmul.f32 %v504, %v1118
        %v1142 = vmul.f32 %v505, %v1118
        %v1167 = vrot.slane %v1119, 1
        %v1168 = vrot.slane %v1120, 1
        %v1169 = vsel %vm597, %v1167, %v1168
        %v1170 = vrot.slane %v1121, 1
        %v1171 = vsel %vm597, %v1168, %v1170
        %v1172 = vrot.slane %v1122, 1
        %v1173 = vrot.slane %v1123, 1
        %v1174 = vsel %vm597, %v1172, %v1173
        %v1175 = vrot.slane %v1124, 1
        %v1176 = vsel %vm597, %v1173, %v1175
        %v1177 = vrot.slane %v1125, 1
        %v1178 = vrot.slane %v1126, 1
        %v1179 = vsel %vm597, %v1177, %v1178
        %v1180 = vrot.slane %v1127, 1
        %v1181 = vsel %vm597, %v1178, %v1180
        %v1182 = vrot.slane %v1128, 1
        %v1183 = vrot.slane %v1129, 1
        %v1184 = vsel %vm597, %v1182, %v1183
        %v1185 = vrot.slane %v1130, 1
        %v1186 = vsel %vm597, %v1183, %v1185
        %v1187 = vrot.slane %v1131, 1
        %v1188 = vrot.slane %v1132, 1
        %v1189 = vsel %vm597, %v1187, %v1188
        %v1190 = vrot.slane %v1133, 1
        %v1191 = vsel %vm597, %v1188, %v1190
        %v1192 = vrot.slane %v1134, 1
        %v1193 = vrot.slane %v1135, 1
        %v1194 = vsel %vm597, %v1192, %v1193
        %v1195 = vrot.slane %v1136, 1
        %v1196 = vsel %vm597, %v1193, %v1195
        %v1197 = vrot.slane %v1137, 1
        %v1198 = vrot.slane %v1138, 1
        %v1199 = vsel %vm597, %v1197, %v1198
        %v1200 = vrot.slane %v1139, 1
        %v1201 = vsel %vm597, %v1198, %v1200
        %v1202 = vrot.slane %v1140, 1
        %v1203 = vrot.slane %v1141, 1
        %v1204 = vsel %vm597, %v1202, %v1203
        %v1205 = vrot.slane %v1142, 1
        %v1206 = vsel %vm597, %v1203, %v1205
        %v1223 = vadd.f32 %v1099, %v1169
        %v1224 = vadd.f32 %v1100, %v1171
        %v1225 = vadd.f32 %v1101, %v1174
        %v1226 = vadd.f32 %v1102, %v1176
        %v1227 = vadd.f32 %v1103, %v1179
        %v1228 = vadd.f32 %v1104, %v1181
        %v1229 = vadd.f32 %v1105, %v1184
        %v1230 = vadd.f32 %v1106, %v1186
        %v1231 = vadd.f32 %v1107, %v1189
        %v1232 = vadd.f32 %v1108, %v1191
        %v1233 = vadd.f32 %v1109, %v1194
        %v1234 = vadd.f32 %v1110, %v1196
        %v1235 = vadd.f32 %v1111, %v1199
        %v1236 = vadd.f32 %v1112, %v1201
        %v1237 = vadd.f32 %v1113, %v1204
        %v1238 = vadd.f32 %v1114, %v1206
        %v1239 = vlaneseq
        %v1240 = vshrl.u32 %v1239, 7
        %v1241 = vsub.s32 2, %v1240
        %v1242 = vrot.slane %v508, %v1241
        %v1243 = vmul.f32 %v482, %v1242
        %v1244 = vmul.f32 %v483, %v1242
        %v1245 = vmul.f32 %v484, %v1242
        %v1246 = vmul.f32 %v485, %v1242
        %v1247 = vmul.f32 %v486, %v1242
        %v1248 = vmul.f32 %v487, %v1242
        %v1249 = vmul.f32 %v488, %v1242
        %v1250 = vmul.f32 %v489, %v1242
        %v1251 = vmul.f32 %v490, %v1242
        %v1252 = vmul.f32 %v491, %v1242
        %v1253 = vmul.f32 %v492, %v1242
        %v1254 = vmul.f32 %v493, %v1242
        %v1255 = vmul.f32 %v494, %v1242
        %v1256 = vmul.f32 %v495, %v1242
        %v1257 = vmul.f32 %v496, %v1242
        %v1258 = vmul.f32 %v497, %v1242
        %v1259 = vmul.f32 %v498, %v1242
        %v1260 = vmul.f32 %v499, %v1242
        %v1261 = vmul.f32 %v500, %v1242
        %v1262 = vmul.f32 %v501, %v1242
        %v1263 = vmul.f32 %v502, %v1242
        %v1264 = vmul.f32 %v503, %v1242
        %v1265 = vmul.f32 %v504, %v1242
        %v1266 = vmul.f32 %v505, %v1242
        %v1291 = vrot.slane %v1243, 2
        %v1292 = vrot.slane %v1244, 2
        %v1293 = vsel %vm722, %v1291, %v1292
        %v1294 = vrot.slane %v1245, 2
        %v1295 = vsel %vm722, %v1292, %v1294
        %v1296 = vrot.slane %v1246, 2
        %v1297 = vrot.slane %v1247, 2
        %v1298 = vsel %vm722, %v1296, %v1297
        %v1299 = vrot.slane %v1248, 2
        %v1300 = vsel %vm722, %v1297, %v1299
        %v1301 = vrot.slane %v1249, 2
        %v1302 = vrot.slane %v1250, 2
        %v1303 = vsel %vm722, %v1301, %v1302
        %v1304 = vrot.slane %v1251, 2
        %v1305 = vsel %vm722, %v1302, %v1304
        %v1306 = vrot.slane %v1252, 2
        %v1307 = vrot.slane %v1253, 2
        %v1308 = vsel %vm722, %v1306, %v1307
        %v1309 = vrot.slane %v1254, 2
        %v1310 = vsel %vm722, %v1307, %v1309
        %v1311 = vrot.slane %v1255, 2
        %v1312 = vrot.slane %v1256, 2
        %v1313 = vsel %vm722, %v1311, %v1312
        %v1314 = vrot.slane %v1257, 2
        %v1315 = vsel %vm722, %v1312, %v1314
        %v1316 = vrot.slane %v1258, 2
        %v1317 = vrot.slane %v1259, 2
        %v1318 = vsel %vm722, %v1316, %v1317
        %v1319 = vrot.slane %v1260, 2
        %v1320 = vsel %vm722, %v1317, %v1319
        %v1321 = vrot.slane %v1261, 2
        %v1322 = vrot.slane %v1262, 2
        %v1323 = vsel %vm722, %v1321, %v1322
        %v1324 = vrot.slane %v1263, 2
        %v1325 = vsel %vm722, %v1322, %v1324
        %v1326 = vrot.slane %v1264, 2
        %v1327 = vrot.slane %v1265, 2
        %v1328 = vsel %vm722, %v1326, %v1327
        %v1329 = vrot.slane %v1266, 2
        %v1330 = vsel %vm722, %v1327, %v1329
        %v1347 = vadd.f32 %v1223, %v1293
        %v1348 = vadd.f32 %v1224, %v1295
        %v1349 = vadd.f32 %v1225, %v1298
        %v1350 = vadd.f32 %v1226, %v1300
        %v1351 = vadd.f32 %v1227, %v1303
        %v1352 = vadd.f32 %v1228, %v1305
        %v1353 = vadd.f32 %v1229, %v1308
        %v1354 = vadd.f32 %v1230, %v1310
        %v1355 = vadd.f32 %v1231, %v1313
        %v1356 = vadd.f32 %v1232, %v1315
        %v1357 = vadd.f32 %v1233, %v1318
        %v1358 = vadd.f32 %v1234, %v1320
        %v1359 = vadd.f32 %v1235, %v1323
        %v1360 = vadd.f32 %v1236, %v1325
        %v1361 = vadd.f32 %v1237, %v1328
        %v1362 = vadd.f32 %v1238, %v1330
        %v1363 = vld [vmem:[%s3] sm:$0x1]
        %v1365 = vlaneseq
        %v1366 = vshrl.u32 %v1365, 7
        %v1367 = vsub.s32 0, %v1366
        %v1368 = vrot.slane %v1363, %v1367
        %v1370 = vadd.f32 %v1347, %v1368
        %v1371 = vadd.f32 %v1348, %v1368
        %v1372 = vadd.f32 %v1349, %v1368
        %v1373 = vadd.f32 %v1350, %v1368
        %v1374 = vadd.f32 %v1351, %v1368
        %v1375 = vadd.f32 %v1352, %v1368
        %v1376 = vadd.f32 %v1353, %v1368
        %v1377 = vadd.f32 %v1354, %v1368
        %v1378 = vadd.f32 %v1355, %v1368
        %v1379 = vadd.f32 %v1356, %v1368
        %v1380 = vadd.f32 %v1357, %v1368
        %v1381 = vadd.f32 %v1358, %v1368
        %v1382 = vadd.f32 %v1359, %v1368
        %v1383 = vadd.f32 %v1360, %v1368
        %v1384 = vadd.f32 %v1361, %v1368
        %v1385 = vadd.f32 %v1362, %v1368
        %v1386 = vmax.f32 %v1370, 0.0
        %v1387 = vmax.f32 %v1371, 0.0
        %v1388 = vmax.f32 %v1372, 0.0
        %v1389 = vmax.f32 %v1373, 0.0
        %v1390 = vmax.f32 %v1374, 0.0
        %v1391 = vmax.f32 %v1375, 0.0
        %v1392 = vmax.f32 %v1376, 0.0
        %v1393 = vmax.f32 %v1377, 0.0
        %v1394 = vmax.f32 %v1378, 0.0
        %v1395 = vmax.f32 %v1379, 0.0
        %v1396 = vmax.f32 %v1380, 0.0
        %v1397 = vmax.f32 %v1381, 0.0
        %v1398 = vmax.f32 %v1382, 0.0
        %v1399 = vmax.f32 %v1383, 0.0
        %v1400 = vmax.f32 %v1384, 0.0
        %v1401 = vmax.f32 %v1385, 0.0
        %v1402 = vld [vmem:[%s2] sm:$0xff]
        %v1403 = vld [vmem:[%s2 + $0x8] sm:$0xff]
        %v1404 = vld [vmem:[%s2 + $0x10] sm:$0xff]
        %v1405 = vld [vmem:[%s2 + $0x18] sm:$0xff]
        %v1406 = vld [vmem:[%s2 + $0x20] sm:$0xff]
        %v1407 = vld [vmem:[%s2 + $0x28] sm:$0xff]
        %v1408 = vld [vmem:[%s2 + $0x30] sm:$0xff]
        %v1409 = vld [vmem:[%s2 + $0x38] sm:$0xff]
        %v1410 = vld [vmem:[%s2 + $0x40] sm:$0xff]
        %v1411 = vld [vmem:[%s2 + $0x48] sm:$0xff]
        %v1412 = vld [vmem:[%s2 + $0x50] sm:$0xff]
        %v1413 = vld [vmem:[%s2 + $0x58] sm:$0xff]
        %v1414 = vld [vmem:[%s2 + $0x60] sm:$0xff]
        %v1415 = vld [vmem:[%s2 + $0x68] sm:$0xff]
        %v1416 = vld [vmem:[%s2 + $0x70] sm:$0xff]
        %v1417 = vld [vmem:[%s2 + $0x78] sm:$0xff]
        %v1418 = vld [vmem:[%s4] sm:$0x1]
        %v1420 = vlaneseq
        %v1421 = vshrl.u32 %v1420, 7
        %v1422 = vsub.s32 0, %v1421
        %v1423 = vrot.slane %v1418, %v1422
        %1425 = vmatprep.subr.mxu0 0.0
        %1426 = vmatpush1.msra.mxu0 %v1402
        %1427 = vmatprep.subr.mxu0 0.0
        %1428 = vmatpush1.msra.mxu0 %v1403
        %1429 = vmatprep.subr.mxu0 0.0
        %1430 = vmatpush1.msra.mxu0 %v1404
        %1431 = vmatprep.subr.mxu0 0.0
        %1432 = vmatpush1.msra.mxu0 %v1405
        %1433 = vmatprep.subr.mxu0 0.0
        %1434 = vmatpush1.msra.mxu0 %v1406
        %1435 = vmatprep.subr.mxu0 0.0
        %1436 = vmatpush1.msra.mxu0 %v1407
        %1437 = vmatprep.subr.mxu0 0.0
        %1438 = vmatpush1.msra.mxu0 %v1408
        %1439 = vmatprep.subr.mxu0 0.0
        %1440 = vmatpush1.msra.mxu0 %v1409
        %1441 = vmatprep.subr.mxu0 0.0
        %1442 = vmatpush1.msra.mxu0 %v1410
        %1443 = vmatprep.subr.mxu0 0.0
        %1444 = vmatpush1.msra.mxu0 %v1411
        %1445 = vmatprep.subr.mxu0 0.0
        %1446 = vmatpush1.msra.mxu0 %v1412
        %1447 = vmatprep.subr.mxu0 0.0
        %1448 = vmatpush1.msra.mxu0 %v1413
        %1449 = vmatprep.subr.mxu0 0.0
        %1450 = vmatpush1.msra.mxu0 %v1414
        %1451 = vmatprep.subr.mxu0 0.0
        %1452 = vmatpush1.msra.mxu0 %v1415
        %1453 = vmatprep.subr.mxu0 0.0
        %1454 = vmatpush1.msra.mxu0 %v1416
        %1455 = vmatprep.subr.mxu0 0.0
        %1456 = vmatpush1.msra.mxu0 %v1417
        %1457 = vmatprep.subr.mxu0 0.0
        %1458 = vmatpush1.msra.mxu0 0.0
        %1459 = vmatprep.subr.mxu0 0.0
        %1460 = vmatpush1.msra.mxu0 0.0
        %1461 = vmatprep.subr.mxu0 0.0
        %1462 = vmatpush1.msra.mxu0 0.0
        %1463 = vmatprep.subr.mxu0 0.0
        %1464 = vmatpush1.msra.mxu0 0.0
        %1465 = vmatprep.subr.mxu0 0.0
        %1466 = vmatpush1.msra.mxu0 0.0
        %1467 = vmatprep.subr.mxu0 0.0
        %1468 = vmatpush1.msra.mxu0 0.0
        %1469 = vmatprep.subr.mxu0 0.0
        %1470 = vmatpush1.msra.mxu0 0.0
        %1471 = vmatprep.subr.mxu0 0.0
        %1472 = vmatpush1.msra.mxu0 0.0
        %1473 = vmatprep.subr.mxu0 0.0
        %1474 = vmatpush1.msra.mxu0 0.0
        %1475 = vmatprep.subr.mxu0 0.0
        %1476 = vmatpush1.msra.mxu0 0.0
        %1477 = vmatprep.subr.mxu0 0.0
        %1478 = vmatpush1.msra.mxu0 0.0
        %1479 = vmatprep.subr.mxu0 0.0
        %1480 = vmatpush1.msra.mxu0 0.0
        %1481 = vmatprep.subr.mxu0 0.0
        %1482 = vmatpush1.msra.mxu0 0.0
        %1483 = vmatprep.subr.mxu0 0.0
        %1484 = vmatpush1.msra.mxu0 0.0
        %1485 = vmatprep.subr.mxu0 0.0
        %1486 = vmatpush1.msra.mxu0 0.0
        %1487 = vmatprep.subr.mxu0 0.0
        %1488 = vmatpush1.msra.mxu0 0.0
        %1489 = vmatprep.mubr.f32.mxu0 0.0
        %1490 = vmatmul.mubr.f32.gmra.mrb[0].mxu0 %v1386
        %v1491 = vpop.f32.mrb[0].mxu0
        %v1492 = vadd.f32 %v1423, %v1491
        %v1493 = vpop.f32.mrb[0].mxu0
        %1494 = vmatprep.mubr.f32.mxu0 0.0
        %1495 = vmatmul.mubr.f32.gmra.mrb[0].mxu0 %v1387
        %v1496 = vpop.f32.mrb[0].mxu0
        %v1497 = vadd.f32 %v1423, %v1496
        %v1498 = vpop.f32.mrb[0].mxu0
        %1499 = vmatprep.mubr.f32.mxu0 0.0
        %1500 = vmatmul.mubr.f32.gmra.mrb[0].mxu0 %v1388
        %v1501 = vpop.f32.mrb[0].mxu0
        %v1502 = vadd.f32 %v1423, %v1501
        %v1503 = vpop.f32.mrb[0].mxu0
        %1504 = vmatprep.mubr.f32.mxu0 0.0
        %1505 = vmatmul.mubr.f32.gmra.mrb[0].mxu0 %v1389
        %v1506 = vpop.f32.mrb[0].mxu0
        %v1507 = vadd.f32 %v1423, %v1506
        %v1508 = vpop.f32.mrb[0].mxu0
        %1509 = vmatprep.mubr.f32.mxu0 0.0
        %1510 = vmatmul.mubr.f32.gmra.mrb[0].mxu0 %v1390
        %v1511 = vpop.f32.mrb[0].mxu0
        %v1512 = vadd.f32 %v1423, %v1511
        %v1513 = vpop.f32.mrb[0].mxu0
        %1514 = vmatprep.mubr.f32.mxu0 0.0
        %1515 = vmatmul.mubr.f32.gmra.mrb[0].mxu0 %v1391
        %v1516 = vpop.f32.mrb[0].mxu0
        %v1517 = vadd.f32 %v1423, %v1516
        %v1518 = vpop.f32.mrb[0].mxu0
        %1519 = vmatprep.mubr.f32.mxu0 0.0
        %1520 = vmatmul.mubr.f32.gmra.mrb[0].mxu0 %v1392
        %v1521 = vpop.f32.mrb[0].mxu0
        %v1522 = vadd.f32 %v1423, %v1521
        %v1523 = vpop.f32.mrb[0].mxu0
        %1524 = vmatprep.mubr.f32.mxu0 0.0
        %1525 = vmatmul.mubr.f32.gmra.mrb[0].mxu0 %v1393
        %v1526 = vpop.f32.mrb[0].mxu0
        %v1527 = vadd.f32 %v1423, %v1526
        %v1528 = vpop.f32.mrb[0].mxu0
        %1529 = vmatprep.mubr.f32.mxu0 0.0
        %1530 = vmatmul.mubr.f32.gmra.mrb[0].mxu0 %v1394
        %v1531 = vpop.f32.mrb[0].mxu0
        %v1532 = vadd.f32 %v1423, %v1531
        %v1533 = vpop.f32.mrb[0].mxu0
        %1534 = vmatprep.mubr.f32.mxu0 0.0
        %1535 = vmatmul.mubr.f32.gmra.mrb[0].mxu0 %v1395
        %v1536 = vpop.f32.mrb[0].mxu0
        %v1537 = vadd.f32 %v1423, %v1536
        %v1538 = vpop.f32.mrb[0].mxu0
        %1539 = vmatprep.mubr.f32.mxu0 0.0
        %1540 = vmatmul.mubr.f32.gmra.mrb[0].mxu0 %v1396
        %v1541 = vpop.f32.mrb[0].mxu0
        %v1542 = vadd.f32 %v1423, %v1541
        %v1543 = vpop.f32.mrb[0].mxu0
        %1544 = vmatprep.mubr.f32.mxu0 0.0
        %1545 = vmatmul.mubr.f32.gmra.mrb[0].mxu0 %v1397
        %v1546 = vpop.f32.mrb[0].mxu0
        %v1547 = vadd.f32 %v1423, %v1546
        %v1548 = vpop.f32.mrb[0].mxu0
        %1549 = vmatprep.mubr.f32.mxu0 0.0
        %1550 = vmatmul.mubr.f32.gmra.mrb[0].mxu0 %v1398
        %v1551 = vpop.f32.mrb[0].mxu0
        %v1552 = vadd.f32 %v1423, %v1551
        %v1553 = vpop.f32.mrb[0].mxu0
        %1554 = vmatprep.mubr.f32.mxu0 0.0
        %1555 = vmatmul.mubr.f32.gmra.mrb[0].mxu0 %v1399
        %v1556 = vpop.f32.mrb[0].mxu0
        %v1557 = vadd.f32 %v1423, %v1556
        %v1558 = vpop.f32.mrb[0].mxu0
        %1559 = vmatprep.mubr.f32.mxu0 0.0
        %1560 = vmatmul.mubr.f32.gmra.mrb[0].mxu0 %v1400
        %v1561 = vpop.f32.mrb[0].mxu0
        %v1562 = vadd.f32 %v1423, %v1561
        %v1563 = vpop.f32.mrb[0].mxu0
        %1564 = vmatprep.mubr.f32.mxu0 0.0
        %1565 = vmatmul.mubr.f32.gmra.mrb[0].mxu0 %v1401
        %v1566 = vpop.f32.mrb[0].mxu0
        %v1567 = vadd.f32 %v1423, %v1566
        %v1568 = vpop.f32.mrb[0].mxu0
        %1569 = vdwg.mxu0
        %v1570 = vmax.f32 %v1492, 0.0
        %v1571 = vmax.f32 %v1497, 0.0
        %v1572 = vmax.f32 %v1502, 0.0
        %v1573 = vmax.f32 %v1507, 0.0
        %v1574 = vmax.f32 %v1512, 0.0
        %v1575 = vmax.f32 %v1517, 0.0
        %v1576 = vmax.f32 %v1522, 0.0
        %v1577 = vmax.f32 %v1527, 0.0
        %v1578 = vmax.f32 %v1532, 0.0
        %v1579 = vmax.f32 %v1537, 0.0
        %v1580 = vmax.f32 %v1542, 0.0
        %v1581 = vmax.f32 %v1547, 0.0
        %v1582 = vmax.f32 %v1552, 0.0
        %v1583 = vmax.f32 %v1557, 0.0
        %v1584 = vmax.f32 %v1562, 0.0
        %v1585 = vmax.f32 %v1567, 0.0
        %1586 = vst [vmem:[%s190] sm:$0xff] %v1570
        %1587 = vst [vmem:[%s190 + $0x8] sm:$0xff] %v1571
        %1588 = vst [vmem:[%s190 + $0x10] sm:$0xff] %v1572
        %1589 = vst [vmem:[%s190 + $0x18] sm:$0xff] %v1573
        %1590 = vst [vmem:[%s190 + $0x20] sm:$0xff] %v1574
        %1591 = vst [vmem:[%s190 + $0x28] sm:$0xff] %v1575
        %1592 = vst [vmem:[%s190 + $0x30] sm:$0xff] %v1576
        %1593 = vst [vmem:[%s190 + $0x38] sm:$0xff] %v1577
        %1594 = vst [vmem:[%s190 + $0x40] sm:$0xff] %v1578
        %1595 = vst [vmem:[%s190 + $0x48] sm:$0xff] %v1579
        %1596 = vst [vmem:[%s190 + $0x50] sm:$0xff] %v1580
        %1597 = vst [vmem:[%s190 + $0x58] sm:$0xff] %v1581
        %1598 = vst [vmem:[%s190 + $0x60] sm:$0xff] %v1582
        %1599 = vst [vmem:[%s190 + $0x68] sm:$0xff] %v1583
        %1600 = vst [vmem:[%s190 + $0x70] sm:$0xff] %v1584
        %1601 = vst [vmem:[%s190 + $0x78] sm:$0xff] %v1585
        %s1602 = sand.u32 %s125, 1
        %s1603 = scalar_lea.sflag [#allocation5], %s1602
        %s1604 = sand.u32 %s125, 1
        %s1605 = smul.addr %s1604, 128
        %s1606 = scalar_lea.vmem [#allocation4], %s1605
        // Predicated region
        $region119: #{tpu_custom_call.1} parent=35 // pred_check
          %p1607 = pneg %p135
        $region120: #{tpu_custom_call.1} parent=35 // pred_check_branch
          %1609 = sbr.rel (%p1607) target = $region122
        $region121: #{tpu_custom_call.1} parent=35 // pred_region
          %s1610 = smul.u32 8, %s24
          %s1612 = ssub.s32 2048, 2048
          %1613 = vsyncadd %s1603, %s1612
          %s1614 = smul.addr %s1610, 2
          %s1615 = smul.addr %s23, 32
          %s1616 = sadd.s32 %s1614, %s1615
          %s1617 = smul.addr %s1616, 128
          %s1618 = scalar_lea.hbm %s5, %s1617
          %s1619 = sshll.u32 %s1606, 4
          %s1620 = int_to_ptr.vmem [resolvable:$true] %s1619
          %1625 = dma.vmem_to_hbm [thread:$0]  %s1620, 2048, %s1618, %s1603, 128, 128, 8
        $region122: #{tpu_custom_call.1} parent=35 // pred_fallthru
          _
      $region36: #{tpu_custom_call.1} parent=5 // pred_fallthru
        _
      %p1626 = scmp.le.s32.totalorder 2, %s14
      // Predicated region
      $region123: #{tpu_custom_call.1} parent=5 // pred_check
        %p1627 = pneg %p1626
      $region124: #{tpu_custom_call.1} parent=5 // pred_check_branch
        %1629 = sbr.rel (%p1627) target = $region126
      $region125: #{tpu_custom_call.1} parent=5 // pred_region
        %s1630 = ssub.s32 %s14, 2
        // Predicated region
        $region127: #{tpu_custom_call.1} parent=125 // pred_check
          %p1631 = pneg %p141
        $region128: #{tpu_custom_call.1} parent=125 // pred_check_branch
          %1633 = sbr.rel (%p1631) target = $region130
        $region129: #{tpu_custom_call.1} parent=125 // pred_region
          %s1634 = sand.u32 %s126, 1
          %s1635 = scalar_lea.sflag [#allocation5], %s1634
          %s1636 = sand.u32 %s126, 1
          %s1637 = smul.addr %s1636, 128
          %s1638 = scalar_lea.vmem [#allocation4], %s1637
          %1639 = dma.done %s1635, 2048
        $region130: #{tpu_custom_call.1} parent=125 // pred_fallthru
          _
      $region126: #{tpu_custom_call.1} parent=5 // pred_fallthru
        _
    $region6: #{tpu_custom_call.1} parent=1 // loop_footer
      %s18 = sadd.s32 1, %s14
    $region7: #{tpu_custom_call.1} parent=1 // loop_footer_branch
      %13 = sbr.rel target = $region3
    $region8: #{tpu_custom_call.1} parent=1 // loop_exit
      _
    %1640 = vsyncpa [#allocation5], 1
    %s1641 = scalar_lea.sflag [#allocation5], 1
    %1642 = vsyncpa %s1641, 1
  %1643 = vsyncmov [#allocation3]
  %s1644 = vpop.sfrf %1643
  %p1645 = scmp.eq.s32.totalorder %s1644, 0
  %p1646 = pneg %p1645
  %1648 = shalt.err (%p1646)
  %s1649 = scalar_lea.sflag [#allocation3], 1
  %1650 = vsyncmov %s1649
  %s1651 = vpop.sfrf %1650
  %p1652 = scmp.eq.s32.totalorder %s1651, 0
  %p1653 = pneg %p1652
  %1655 = shalt.err (%p1653)

</llo_original>
